<compile_context>
chip_gen: v5e
topology: v5e:2x2
jax: 0.10.0
libtpu: 0.0.40
codegen_flags: <defaults>
</compile_context>

<pallas_src>
import functools
import numpy as np
import jax
import jax.numpy as jnp
from jax.experimental import pallas as pl
from jax.experimental.pallas import tpu as pltpu


def _cnn_kernel(x_ref, w_ref, o_ref, slab_ref, hpad_ref, *, K, C, P, L, Bt):
    # x_ref:    (C, Lp*Bt)        bf16 zero-padded, batch-swizzled input block
    # w_ref:    (C, K*C + 8)      bf16 BN-folded weights + shift column + 0-pad
    # o_ref:    (C, L*Bt)         f32 lane-dense output block (cols = l*Bt + b)
    # slab_ref: (K*C + 8, L*Bt)   bf16 im2col slab scratch (reused by both convs)
    # hpad_ref: (C, Lp*Bt)        bf16 zero-bordered padded intermediate scratch
    WL = L * Bt
    KC = K * C
    dt = slab_ref.dtype

    # Rows [KC, KC+8): a ones row (folds the per-channel shift into the MXU
    # contraction) followed by 7 zero rows (keeps padded rows well-defined).
    slab_ref[pl.ds(KC, 8), :] = jnp.concatenate(
        [jnp.ones((1, WL), dt), jnp.zeros((7, WL), dt)], axis=0)
    # Zero the borders of the padded intermediate (its middle is overwritten
    # every step, the borders never are).
    if P > 0:
        zb = jnp.zeros((C, P * Bt), dt)
        hpad_ref[:, pl.ds(0, P * Bt)] = zb
        hpad_ref[:, pl.ds((P + L) * Bt, P * Bt)] = zb

    wmat = w_ref[...]

    def conv(tap):
        # im2col slab: rows (k, c), cols (l, b).  With the (l, b) lane order,
        # tap k is a single contiguous lane slice of the swizzled source.
        for k in range(K):
            slab_ref[pl.ds(k * C, C), :] = tap(k)
        return jnp.dot(wmat, slab_ref[...], preferred_element_type=jnp.float32)

    # conv1 + BN (both folded into wmat); Dropout is identity in eval mode.
    h = conv(lambda k: x_ref[:, pl.ds(k * Bt, WL)])              # (C, L*Bt) f32
    # Re-pad in VMEM (one contiguous lane store) and apply the same conv again.
    hpad_ref[:, pl.ds(P * Bt, WL)] = h.astype(dt)
    o_ref[...] = conv(lambda k: hpad_ref[:, pl.ds(k * Bt, WL)]).astype(o_ref.dtype)


def _pick_batch_tile(B, L):
    """Pick Bt so each grid step has a wide, lane-dense output block."""
    target_lanes = 2048                      # amortize ~0.35us per-step overhead
    bt = max(1, min(B, -(-target_lanes // L)))
    # v7x megacore: keep >= 2 grid steps if each still has >= 256 output lanes.
    if bt >= B and B > 1 and ((B + 1) // 2) * L >= 256:
        bt = (B + 1) // 2
    # Prefer Bt*L to be a multiple of 256 (v6e/v7x MXU lane width) if that does
    # not shrink the tile below half its size.
    for cand in range(bt, 0, -1):
        if (cand * L) % 256 == 0:
            if 2 * cand >= bt:
                bt = cand
            break
    return bt


def cnn_forward(frames, weight, bias, gamma, beta, running_mean, running_var,
                *, kernel_size, padding, eps=1e-5, batch_tile=None):
    """frames: (B, C, L) f32; weight: (C_out, C_in, K) as in PyTorch Conv1d."""
    B, C_in, L = frames.shape
    C_out, C_in_w, K = weight.shape
    assert C_in_w == C_in and C_in == C_out, "module re-applies the same conv"
    assert K == kernel_size
    P = padding
    Lp = L + 2 * P

    Bt = _pick_batch_tile(B, L) if batch_tile is None else max(1, min(batch_tile, B))
    B_pad = -(-B // Bt) * Bt
    NB = B_pad // Bt

    # Fold BN into the conv weights and fold the per-channel shift into the
    # matmul as an extra contraction column block (matched by a ones row in the
    # slab); contraction depth = K*C_in + 8 (sublane-aligned).
    inv_std = 1.0 / jnp.sqrt(running_var + eps)
    scale = gamma * inv_std                                          # (C_out,)
    w_packed = jnp.transpose(weight * scale[:, None, None], (0, 2, 1)) \
                  .reshape(C_out, K * C_in)                          # cols = (k, c_in)
    shift = ((bias - running_mean) * scale + beta)[:, None]          # (C_out, 1)
    w_aug = jnp.concatenate(
        [w_packed, shift, jnp.zeros((C_out, 7), w_packed.dtype)],
        axis=1).astype(jnp.bfloat16)                                 # (C_out, K*C_in+8)

    # Zero-pad (batch + length) and swizzle so the lane index within a block is
    # (l*Bt + b): every conv tap becomes one contiguous lane slice of width
    # L*Bt, and the output block is lane-dense.
    x_pad = jnp.pad(frames, ((0, B_pad - B), (0, 0), (P, P)))
    x_sw = (x_pad.reshape(NB, Bt, C_in, Lp)
                 .transpose(0, 2, 3, 1)
                 .reshape(NB, C_in, Lp * Bt)
                 .astype(jnp.bfloat16))

    # VMEM footprint per step ~= (K*C_in+8) * L*Bt * 2B (slab, reused by both
    # convs) + small input/output/intermediate blocks: well under the default
    # scoped limit for the default ~2048-lane target on all generations.
    kernel = functools.partial(_cnn_kernel, K=K, C=C_out, P=P, L=L, Bt=Bt)
    out = pl.pallas_call(
        kernel,
        out_shape=jax.ShapeDtypeStruct((NB, C_out, L * Bt), jnp.float32),
        grid_spec=pltpu.PrefetchScalarGridSpec(
            num_scalar_prefetch=0,
            grid=(NB,),
            in_specs=[
                pl.BlockSpec((None, C_in, Lp * Bt), lambda g: (g, 0, 0)),
                pl.BlockSpec((C_out, K * C_in + 8), lambda g: (0, 0)),
            ],
            out_specs=pl.BlockSpec((None, C_out, L * Bt), lambda g: (g, 0, 0)),
            scratch_shapes=[
                pltpu.VMEM((K * C_in + 8, L * Bt), jnp.bfloat16),  # im2col slab
                pltpu.VMEM((C_out, Lp * Bt), jnp.bfloat16),        # padded intermediate
            ],
        ),
        compiler_params=pltpu.CompilerParams(
            dimension_semantics=("parallel",)),
    )(x_sw, w_aug)

    # Un-swizzle lanes (l, b) back to (B, C, L).  For large B a downstream
    # consumer could take the packed (NB, C_out, L*Bt) layout and skip this pass.
    out = (out.reshape(NB, C_out, L, Bt)
              .transpose(0, 3, 1, 2)
              .reshape(B_pad, C_out, L))
    return out[:B]


def _ref_forward(frames, weight, bias, gamma, beta, rm, rv, *, padding, eps=1e-5):
    """Plain-JAX reference of the eval-mode forward pass (high precision)."""
    def conv(h):
        return jax.lax.conv_general_dilated(
            h, weight, window_strides=(1,), padding=[(padding, padding)],
            dimension_numbers=("NCH", "OIH", "NCH"),
            precision=jax.lax.Precision.HIGHEST)
    scale = gamma / jnp.sqrt(rv + eps)
    shift = beta - rm * scale
    h = conv(frames) + bias[None, :, None]
    h = h * scale[None, :, None] + shift[None, :, None]
    h = conv(h) + bias[None, :, None]
    h = h * scale[None, :, None] + shift[None, :, None]
    return h


if __name__ == "__main__":
    # Small shapes consistent with the module: input_size == output_size so the
    # conv can be applied twice; kernel_size/padding/stride from the script.
    B, C, L = 2, 8, 64
    kernel_size, padding, stride = 31, 15, 1

    key = jax.random.PRNGKey(0)
    kx, kw, kb, kg, kbe, km, kv = jax.random.split(key, 7)

    frames = jax.random.normal(kx, (B, C, L), dtype=jnp.float32)

    # Conv1d weight (C_out, C_in, K) with xavier_normal init (as in __init__).
    fan_in, fan_out = C * kernel_size, C * kernel_size
    xavier_std = np.sqrt(2.0 / (fan_in + fan_out))
    weight = xavier_std * jax.random.normal(kw, (C, C, kernel_size), dtype=jnp.float32)
    # Conv1d bias (PyTorch default: uniform in +-1/sqrt(fan_in)).
    bound = 1.0 / np.sqrt(fan_in)
    bias = jax.random.uniform(kb, (C,), minval=-bound, maxval=bound, dtype=jnp.float32)

    # BatchNorm1d parameters / running stats (deterministic, non-trivial).
    gamma = 1.0 + 0.1 * jax.random.normal(kg, (C,), dtype=jnp.float32)
    beta = 0.1 * jax.random.normal(kbe, (C,), dtype=jnp.float32)
    running_mean = 0.1 * jax.random.normal(km, (C,), dtype=jnp.float32)
    running_var = jax.random.uniform(kv, (C,), minval=0.5, maxval=1.5, dtype=jnp.float32)

    out = cnn_forward(frames, weight, bias, gamma, beta, running_mean, running_var,
                      kernel_size=kernel_size, padding=padding)
    out = jax.block_until_ready(out)

    ref = _ref_forward(frames, weight, bias, gamma, beta, running_mean, running_var,
                       padding=padding)

    out_np = np.asarray(out)
    ref_np = np.asarray(ref)
    # Accuracy budget: bf16 operands with f32 MXU accumulation across two
    # chained depth-248 contractions plus a bf16 intermediate give ~0.5%
    # relative deviation from the f32/HIGHEST reference; tolerances reflect it.
    np.testing.assert_allclose(out_np, ref_np, rtol=5e-2, atol=5e-2)
    rel = np.linalg.norm(out_np - ref_np) / np.linalg.norm(ref_np)
    assert rel < 2e-2, f"relative Frobenius error too large: {rel}"

    print("KERNEL_OK")
</pallas_src>

<mosaic_0001>
module attributes {stable_mosaic.version = 11 : i64} {
  func.func @_cnn_kernel(%arg0: i32, %arg1: memref<1x8x188xbf16, #tpu.memory_space<vmem>>, %arg2: memref<8x256xbf16, #tpu.memory_space<vmem>>, %arg3: memref<1x8x128xf32, #tpu.memory_space<vmem>>, %arg4: memref<256x128xbf16, #tpu.memory_space<vmem>>, %arg5: memref<8x188xbf16, #tpu.memory_space<vmem>>) attributes {dimension_semantics = [#tpu.dimension_semantics<parallel>], iteration_bounds = array<i64: 1>, scalar_prefetch = 0 : i64, scratch_operands = 2 : i64, tpu.core_type = #tpu.core_type<tc>, window_params = [{transform_indices = @transform_0, window_bounds = array<i64: 1, 8, 188>}, {pipeline_mode = #tpu.pipeline_mode<synchronous>, transform_indices = @transform_1, window_bounds = array<i64: 8, 256>}, {transform_indices = @transform_2, window_bounds = array<i64: 1, 8, 128>}]} {
    %cst = arith.constant 1.000000e+00 : bf16
    %0 = vector.broadcast %cst : bf16 to vector<1x128xbf16>
    %cst_0 = arith.constant 0.000000e+00 : bf16
    %1 = vector.broadcast %cst_0 : bf16 to vector<7x128xbf16>
    %2 = tpu.concatenate %0, %1 in 0 : vector<1x128xbf16>, vector<7x128xbf16> -> vector<8x128xbf16>
    %c248 = arith.constant 248 : index
    %c0 = arith.constant 0 : index
    %3 = vector.load %arg4[%c248, %c0] : memref<256x128xbf16, #tpu.memory_space<vmem>>, vector<8x128xbf16>
    tpu.vector_store %arg4[%c248, %c0], %2 {strides = array<i32>} : memref<256x128xbf16, #tpu.memory_space<vmem>>, vector<8x128xbf16>,
    %cst_1 = arith.constant 0.000000e+00 : bf16
    %4 = vector.broadcast %cst_1 : bf16 to vector<8x30xbf16>
    %c0_2 = arith.constant 0 : index
    %c0_3 = arith.constant 0 : index
    %5 = vector.load %arg5[%c0_2, %c0_3] : memref<8x188xbf16, #tpu.memory_space<vmem>>, vector<8x30xbf16>
    tpu.vector_store %arg5[%c0_2, %c0_3], %4 {strides = array<i32>} : memref<8x188xbf16, #tpu.memory_space<vmem>>, vector<8x30xbf16>,
    %c0_4 = arith.constant 0 : index
    %c158 = arith.constant 158 : index
    %6 = vector.load %arg5[%c0_4, %c158] : memref<8x188xbf16, #tpu.memory_space<vmem>>, vector<8x30xbf16>
    tpu.vector_store %arg5[%c0_4, %c158], %4 {strides = array<i32>} : memref<8x188xbf16, #tpu.memory_space<vmem>>, vector<8x30xbf16>,
    %c0_5 = arith.constant 0 : index
    %c0_6 = arith.constant 0 : index
    %7 = vector.load %arg2[%c0_5, %c0_6] : memref<8x256xbf16, #tpu.memory_space<vmem>>, vector<8x256xbf16>
    %c0_7 = arith.constant 0 : index
    %c0_8 = arith.constant 0 : index
    %c0_9 = arith.constant 0 : index
    %8 = vector.load %arg1[%c0_7, %c0_8, %c0_9] : memref<1x8x188xbf16, #tpu.memory_space<vmem>>, vector<1x8x128xbf16>
    %9 = vector.shape_cast %8 : vector<1x8x128xbf16> to vector<8x128xbf16>
    %c0_10 = arith.constant 0 : index
    %c0_11 = arith.constant 0 : index
    %10 = vector.load %arg4[%c0_10, %c0_11] : memref<256x128xbf16, #tpu.memory_space<vmem>>, vector<8x128xbf16>
    tpu.vector_store %arg4[%c0_10, %c0_11], %9 {strides = array<i32>} : memref<256x128xbf16, #tpu.memory_space<vmem>>, vector<8x128xbf16>,
    %c0_12 = arith.constant 0 : index
    %c0_13 = arith.constant 0 : index
    %c2 = arith.constant 2 : index
    %11 = vector.load %arg1[%c0_12, %c0_13, %c2] : memref<1x8x188xbf16, #tpu.memory_space<vmem>>, vector<1x8x128xbf16>
    %12 = vector.shape_cast %11 : vector<1x8x128xbf16> to vector<8x128xbf16>
    %c8 = arith.constant 8 : index
    %c0_14 = arith.constant 0 : index
    %13 = vector.load %arg4[%c8, %c0_14] : memref<256x128xbf16, #tpu.memory_space<vmem>>, vector<8x128xbf16>
    tpu.vector_store %arg4[%c8, %c0_14], %12 {strides = array<i32>} : memref<256x128xbf16, #tpu.memory_space<vmem>>, vector<8x128xbf16>,
    %c0_15 = arith.constant 0 : index
    %c0_16 = arith.constant 0 : index
    %c4 = arith.constant 4 : index
    %14 = vector.load %arg1[%c0_15, %c0_16, %c4] : memref<1x8x188xbf16, #tpu.memory_space<vmem>>, vector<1x8x128xbf16>
    %15 = vector.shape_cast %14 : vector<1x8x128xbf16> to vector<8x128xbf16>
    %c16 = arith.constant 16 : index
    %c0_17 = arith.constant 0 : index
    %16 = vector.load %arg4[%c16, %c0_17] : memref<256x128xbf16, #tpu.memory_space<vmem>>, vector<8x128xbf16>
    tpu.vector_store %arg4[%c16, %c0_17], %15 {strides = array<i32>} : memref<256x128xbf16, #tpu.memory_space<vmem>>, vector<8x128xbf16>,
    %c0_18 = arith.constant 0 : index
    %c0_19 = arith.constant 0 : index
    %c6 = arith.constant 6 : index
    %17 = vector.load %arg1[%c0_18, %c0_19, %c6] : memref<1x8x188xbf16, #tpu.memory_space<vmem>>, vector<1x8x128xbf16>
    %18 = vector.shape_cast %17 : vector<1x8x128xbf16> to vector<8x128xbf16>
    %c24 = arith.constant 24 : index
    %c0_20 = arith.constant 0 : index
    %19 = vector.load %arg4[%c24, %c0_20] : memref<256x128xbf16, #tpu.memory_space<vmem>>, vector<8x128xbf16>
    tpu.vector_store %arg4[%c24, %c0_20], %18 {strides = array<i32>} : memref<256x128xbf16, #tpu.memory_space<vmem>>, vector<8x128xbf16>,
    %c0_21 = arith.constant 0 : index
    %c0_22 = arith.constant 0 : index
    %c8_23 = arith.constant 8 : index
    %20 = vector.load %arg1[%c0_21, %c0_22, %c8_23] : memref<1x8x188xbf16, #tpu.memory_space<vmem>>, vector<1x8x128xbf16>
    %21 = vector.shape_cast %20 : vector<1x8x128xbf16> to vector<8x128xbf16>
    %c32 = arith.constant 32 : index
    %c0_24 = arith.constant 0 : index
    %22 = vector.load %arg4[%c32, %c0_24] : memref<256x128xbf16, #tpu.memory_space<vmem>>, vector<8x128xbf16>
    tpu.vector_store %arg4[%c32, %c0_24], %21 {strides = array<i32>} : memref<256x128xbf16, #tpu.memory_space<vmem>>, vector<8x128xbf16>,
    %c0_25 = arith.constant 0 : index
    %c0_26 = arith.constant 0 : index
    %c10 = arith.constant 10 : index
    %23 = vector.load %arg1[%c0_25, %c0_26, %c10] : memref<1x8x188xbf16, #tpu.memory_space<vmem>>, vector<1x8x128xbf16>
    %24 = vector.shape_cast %23 : vector<1x8x128xbf16> to vector<8x128xbf16>
    %c40 = arith.constant 40 : index
    %c0_27 = arith.constant 0 : index
    %25 = vector.load %arg4[%c40, %c0_27] : memref<256x128xbf16, #tpu.memory_space<vmem>>, vector<8x128xbf16>
    tpu.vector_store %arg4[%c40, %c0_27], %24 {strides = array<i32>} : memref<256x128xbf16, #tpu.memory_space<vmem>>, vector<8x128xbf16>,
    %c0_28 = arith.constant 0 : index
    %c0_29 = arith.constant 0 : index
    %c12 = arith.constant 12 : index
    %26 = vector.load %arg1[%c0_28, %c0_29, %c12] : memref<1x8x188xbf16, #tpu.memory_space<vmem>>, vector<1x8x128xbf16>
    %27 = vector.shape_cast %26 : vector<1x8x128xbf16> to vector<8x128xbf16>
    %c48 = arith.constant 48 : index
    %c0_30 = arith.constant 0 : index
    %28 = vector.load %arg4[%c48, %c0_30] : memref<256x128xbf16, #tpu.memory_space<vmem>>, vector<8x128xbf16>
    tpu.vector_store %arg4[%c48, %c0_30], %27 {strides = array<i32>} : memref<256x128xbf16, #tpu.memory_space<vmem>>, vector<8x128xbf16>,
    %c0_31 = arith.constant 0 : index
    %c0_32 = arith.constant 0 : index
    %c14 = arith.constant 14 : index
    %29 = vector.load %arg1[%c0_31, %c0_32, %c14] : memref<1x8x188xbf16, #tpu.memory_space<vmem>>, vector<1x8x128xbf16>
    %30 = vector.shape_cast %29 : vector<1x8x128xbf16> to vector<8x128xbf16>
    %c56 = arith.constant 56 : index
    %c0_33 = arith.constant 0 : index
    %31 = vector.load %arg4[%c56, %c0_33] : memref<256x128xbf16, #tpu.memory_space<vmem>>, vector<8x128xbf16>
    tpu.vector_store %arg4[%c56, %c0_33], %30 {strides = array<i32>} : memref<256x128xbf16, #tpu.memory_space<vmem>>, vector<8x128xbf16>,
    %c0_34 = arith.constant 0 : index
    %c0_35 = arith.constant 0 : index
    %c16_36 = arith.constant 16 : index
    %32 = vector.load %arg1[%c0_34, %c0_35, %c16_36] : memref<1x8x188xbf16, #tpu.memory_space<vmem>>, vector<1x8x128xbf16>
    %33 = vector.shape_cast %32 : vector<1x8x128xbf16> to vector<8x128xbf16>
    %c64 = arith.constant 64 : index
    %c0_37 = arith.constant 0 : index
    %34 = vector.load %arg4[%c64, %c0_37] : memref<256x128xbf16, #tpu.memory_space<vmem>>, vector<8x128xbf16>
    tpu.vector_store %arg4[%c64, %c0_37], %33 {strides = array<i32>} : memref<256x128xbf16, #tpu.memory_space<vmem>>, vector<8x128xbf16>,
    %c0_38 = arith.constant 0 : index
    %c0_39 = arith.constant 0 : index
    %c18 = arith.constant 18 : index
    %35 = vector.load %arg1[%c0_38, %c0_39, %c18] : memref<1x8x188xbf16, #tpu.memory_space<vmem>>, vector<1x8x128xbf16>
    %36 = vector.shape_cast %35 : vector<1x8x128xbf16> to vector<8x128xbf16>
    %c72 = arith.constant 72 : index
    %c0_40 = arith.constant 0 : index
    %37 = vector.load %arg4[%c72, %c0_40] : memref<256x128xbf16, #tpu.memory_space<vmem>>, vector<8x128xbf16>
    tpu.vector_store %arg4[%c72, %c0_40], %36 {strides = array<i32>} : memref<256x128xbf16, #tpu.memory_space<vmem>>, vector<8x128xbf16>,
    %c0_41 = arith.constant 0 : index
    %c0_42 = arith.constant 0 : index
    %c20 = arith.constant 20 : index
    %38 = vector.load %arg1[%c0_41, %c0_42, %c20] : memref<1x8x188xbf16, #tpu.memory_space<vmem>>, vector<1x8x128xbf16>
    %39 = vector.shape_cast %38 : vector<1x8x128xbf16> to vector<8x128xbf16>
    %c80 = arith.constant 80 : index
    %c0_43 = arith.constant 0 : index
    %40 = vector.load %arg4[%c80, %c0_43] : memref<256x128xbf16, #tpu.memory_space<vmem>>, vector<8x128xbf16>
    tpu.vector_store %arg4[%c80, %c0_43], %39 {strides = array<i32>} : memref<256x128xbf16, #tpu.memory_space<vmem>>, vector<8x128xbf16>,
    %c0_44 = arith.constant 0 : index
    %c0_45 = arith.constant 0 : index
    %c22 = arith.constant 22 : index
    %41 = vector.load %arg1[%c0_44, %c0_45, %c22] : memref<1x8x188xbf16, #tpu.memory_space<vmem>>, vector<1x8x128xbf16>
    %42 = vector.shape_cast %41 : vector<1x8x128xbf16> to vector<8x128xbf16>
    %c88 = arith.constant 88 : index
    %c0_46 = arith.constant 0 : index
    %43 = vector.load %arg4[%c88, %c0_46] : memref<256x128xbf16, #tpu.memory_space<vmem>>, vector<8x128xbf16>
    tpu.vector_store %arg4[%c88, %c0_46], %42 {strides = array<i32>} : memref<256x128xbf16, #tpu.memory_space<vmem>>, vector<8x128xbf16>,
    %c0_47 = arith.constant 0 : index
    %c0_48 = arith.constant 0 : index
    %c24_49 = arith.constant 24 : index
    %44 = vector.load %arg1[%c0_47, %c0_48, %c24_49] : memref<1x8x188xbf16, #tpu.memory_space<vmem>>, vector<1x8x128xbf16>
    %45 = vector.shape_cast %44 : vector<1x8x128xbf16> to vector<8x128xbf16>
    %c96 = arith.constant 96 : index
    %c0_50 = arith.constant 0 : index
    %46 = vector.load %arg4[%c96, %c0_50] : memref<256x128xbf16, #tpu.memory_space<vmem>>, vector<8x128xbf16>
    tpu.vector_store %arg4[%c96, %c0_50], %45 {strides = array<i32>} : memref<256x128xbf16, #tpu.memory_space<vmem>>, vector<8x128xbf16>,
    %c0_51 = arith.constant 0 : index
    %c0_52 = arith.constant 0 : index
    %c26 = arith.constant 26 : index
    %47 = vector.load %arg1[%c0_51, %c0_52, %c26] : memref<1x8x188xbf16, #tpu.memory_space<vmem>>, vector<1x8x128xbf16>
    %48 = vector.shape_cast %47 : vector<1x8x128xbf16> to vector<8x128xbf16>
    %c104 = arith.constant 104 : index
    %c0_53 = arith.constant 0 : index
    %49 = vector.load %arg4[%c104, %c0_53] : memref<256x128xbf16, #tpu.memory_space<vmem>>, vector<8x128xbf16>
    tpu.vector_store %arg4[%c104, %c0_53], %48 {strides = array<i32>} : memref<256x128xbf16, #tpu.memory_space<vmem>>, vector<8x128xbf16>,
    %c0_54 = arith.constant 0 : index
    %c0_55 = arith.constant 0 : index
    %c28 = arith.constant 28 : index
    %50 = vector.load %arg1[%c0_54, %c0_55, %c28] : memref<1x8x188xbf16, #tpu.memory_space<vmem>>, vector<1x8x128xbf16>
    %51 = vector.shape_cast %50 : vector<1x8x128xbf16> to vector<8x128xbf16>
    %c112 = arith.constant 112 : index
    %c0_56 = arith.constant 0 : index
    %52 = vector.load %arg4[%c112, %c0_56] : memref<256x128xbf16, #tpu.memory_space<vmem>>, vector<8x128xbf16>
    tpu.vector_store %arg4[%c112, %c0_56], %51 {strides = array<i32>} : memref<256x128xbf16, #tpu.memory_space<vmem>>, vector<8x128xbf16>,
    %c0_57 = arith.constant 0 : index
    %c0_58 = arith.constant 0 : index
    %c30 = arith.constant 30 : index
    %53 = vector.load %arg1[%c0_57, %c0_58, %c30] : memref<1x8x188xbf16, #tpu.memory_space<vmem>>, vector<1x8x128xbf16>
    %54 = vector.shape_cast %53 : vector<1x8x128xbf16> to vector<8x128xbf16>
    %c120 = arith.constant 120 : index
    %c0_59 = arith.constant 0 : index
    %55 = vector.load %arg4[%c120, %c0_59] : memref<256x128xbf16, #tpu.memory_space<vmem>>, vector<8x128xbf16>
    tpu.vector_store %arg4[%c120, %c0_59], %54 {strides = array<i32>} : memref<256x128xbf16, #tpu.memory_space<vmem>>, vector<8x128xbf16>,
    %c0_60 = arith.constant 0 : index
    %c0_61 = arith.constant 0 : index
    %c32_62 = arith.constant 32 : index
    %56 = vector.load %arg1[%c0_60, %c0_61, %c32_62] : memref<1x8x188xbf16, #tpu.memory_space<vmem>>, vector<1x8x128xbf16>
    %57 = vector.shape_cast %56 : vector<1x8x128xbf16> to vector<8x128xbf16>
    %c128 = arith.constant 128 : index
    %c0_63 = arith.constant 0 : index
    %58 = vector.load %arg4[%c128, %c0_63] : memref<256x128xbf16, #tpu.memory_space<vmem>>, vector<8x128xbf16>
    tpu.vector_store %arg4[%c128, %c0_63], %57 {strides = array<i32>} : memref<256x128xbf16, #tpu.memory_space<vmem>>, vector<8x128xbf16>,
    %c0_64 = arith.constant 0 : index
    %c0_65 = arith.constant 0 : index
    %c34 = arith.constant 34 : index
    %59 = vector.load %arg1[%c0_64, %c0_65, %c34] : memref<1x8x188xbf16, #tpu.memory_space<vmem>>, vector<1x8x128xbf16>
    %60 = vector.shape_cast %59 : vector<1x8x128xbf16> to vector<8x128xbf16>
    %c136 = arith.constant 136 : index
    %c0_66 = arith.constant 0 : index
    %61 = vector.load %arg4[%c136, %c0_66] : memref<256x128xbf16, #tpu.memory_space<vmem>>, vector<8x128xbf16>
    tpu.vector_store %arg4[%c136, %c0_66], %60 {strides = array<i32>} : memref<256x128xbf16, #tpu.memory_space<vmem>>, vector<8x128xbf16>,
    %c0_67 = arith.constant 0 : index
    %c0_68 = arith.constant 0 : index
    %c36 = arith.constant 36 : index
    %62 = vector.load %arg1[%c0_67, %c0_68, %c36] : memref<1x8x188xbf16, #tpu.memory_space<vmem>>, vector<1x8x128xbf16>
    %63 = vector.shape_cast %62 : vector<1x8x128xbf16> to vector<8x128xbf16>
    %c144 = arith.constant 144 : index
    %c0_69 = arith.constant 0 : index
    %64 = vector.load %arg4[%c144, %c0_69] : memref<256x128xbf16, #tpu.memory_space<vmem>>, vector<8x128xbf16>
    tpu.vector_store %arg4[%c144, %c0_69], %63 {strides = array<i32>} : memref<256x128xbf16, #tpu.memory_space<vmem>>, vector<8x128xbf16>,
    %c0_70 = arith.constant 0 : index
    %c0_71 = arith.constant 0 : index
    %c38 = arith.constant 38 : index
    %65 = vector.load %arg1[%c0_70, %c0_71, %c38] : memref<1x8x188xbf16, #tpu.memory_space<vmem>>, vector<1x8x128xbf16>
    %66 = vector.shape_cast %65 : vector<1x8x128xbf16> to vector<8x128xbf16>
    %c152 = arith.constant 152 : index
    %c0_72 = arith.constant 0 : index
    %67 = vector.load %arg4[%c152, %c0_72] : memref<256x128xbf16, #tpu.memory_space<vmem>>, vector<8x128xbf16>
    tpu.vector_store %arg4[%c152, %c0_72], %66 {strides = array<i32>} : memref<256x128xbf16, #tpu.memory_space<vmem>>, vector<8x128xbf16>,
    %c0_73 = arith.constant 0 : index
    %c0_74 = arith.constant 0 : index
    %c40_75 = arith.constant 40 : index
    %68 = vector.load %arg1[%c0_73, %c0_74, %c40_75] : memref<1x8x188xbf16, #tpu.memory_space<vmem>>, vector<1x8x128xbf16>
    %69 = vector.shape_cast %68 : vector<1x8x128xbf16> to vector<8x128xbf16>
    %c160 = arith.constant 160 : index
    %c0_76 = arith.constant 0 : index
    %70 = vector.load %arg4[%c160, %c0_76] : memref<256x128xbf16, #tpu.memory_space<vmem>>, vector<8x128xbf16>
    tpu.vector_store %arg4[%c160, %c0_76], %69 {strides = array<i32>} : memref<256x128xbf16, #tpu.memory_space<vmem>>, vector<8x128xbf16>,
    %c0_77 = arith.constant 0 : index
    %c0_78 = arith.constant 0 : index
    %c42 = arith.constant 42 : index
    %71 = vector.load %arg1[%c0_77, %c0_78, %c42] : memref<1x8x188xbf16, #tpu.memory_space<vmem>>, vector<1x8x128xbf16>
    %72 = vector.shape_cast %71 : vector<1x8x128xbf16> to vector<8x128xbf16>
    %c168 = arith.constant 168 : index
    %c0_79 = arith.constant 0 : index
    %73 = vector.load %arg4[%c168, %c0_79] : memref<256x128xbf16, #tpu.memory_space<vmem>>, vector<8x128xbf16>
    tpu.vector_store %arg4[%c168, %c0_79], %72 {strides = array<i32>} : memref<256x128xbf16, #tpu.memory_space<vmem>>, vector<8x128xbf16>,
    %c0_80 = arith.constant 0 : index
    %c0_81 = arith.constant 0 : index
    %c44 = arith.constant 44 : index
    %74 = vector.load %arg1[%c0_80, %c0_81, %c44] : memref<1x8x188xbf16, #tpu.memory_space<vmem>>, vector<1x8x128xbf16>
    %75 = vector.shape_cast %74 : vector<1x8x128xbf16> to vector<8x128xbf16>
    %c176 = arith.constant 176 : index
    %c0_82 = arith.constant 0 : index
    %76 = vector.load %arg4[%c176, %c0_82] : memref<256x128xbf16, #tpu.memory_space<vmem>>, vector<8x128xbf16>
    tpu.vector_store %arg4[%c176, %c0_82], %75 {strides = array<i32>} : memref<256x128xbf16, #tpu.memory_space<vmem>>, vector<8x128xbf16>,
    %c0_83 = arith.constant 0 : index
    %c0_84 = arith.constant 0 : index
    %c46 = arith.constant 46 : index
    %77 = vector.load %arg1[%c0_83, %c0_84, %c46] : memref<1x8x188xbf16, #tpu.memory_space<vmem>>, vector<1x8x128xbf16>
    %78 = vector.shape_cast %77 : vector<1x8x128xbf16> to vector<8x128xbf16>
    %c184 = arith.constant 184 : index
    %c0_85 = arith.constant 0 : index
    %79 = vector.load %arg4[%c184, %c0_85] : memref<256x128xbf16, #tpu.memory_space<vmem>>, vector<8x128xbf16>
    tpu.vector_store %arg4[%c184, %c0_85], %78 {strides = array<i32>} : memref<256x128xbf16, #tpu.memory_space<vmem>>, vector<8x128xbf16>,
    %c0_86 = arith.constant 0 : index
    %c0_87 = arith.constant 0 : index
    %c48_88 = arith.constant 48 : index
    %80 = vector.load %arg1[%c0_86, %c0_87, %c48_88] : memref<1x8x188xbf16, #tpu.memory_space<vmem>>, vector<1x8x128xbf16>
    %81 = vector.shape_cast %80 : vector<1x8x128xbf16> to vector<8x128xbf16>
    %c192 = arith.constant 192 : index
    %c0_89 = arith.constant 0 : index
    %82 = vector.load %arg4[%c192, %c0_89] : memref<256x128xbf16, #tpu.memory_space<vmem>>, vector<8x128xbf16>
    tpu.vector_store %arg4[%c192, %c0_89], %81 {strides = array<i32>} : memref<256x128xbf16, #tpu.memory_space<vmem>>, vector<8x128xbf16>,
    %c0_90 = arith.constant 0 : index
    %c0_91 = arith.constant 0 : index
    %c50 = arith.constant 50 : index
    %83 = vector.load %arg1[%c0_90, %c0_91, %c50] : memref<1x8x188xbf16, #tpu.memory_space<vmem>>, vector<1x8x128xbf16>
    %84 = vector.shape_cast %83 : vector<1x8x128xbf16> to vector<8x128xbf16>
    %c200 = arith.constant 200 : index
    %c0_92 = arith.constant 0 : index
    %85 = vector.load %arg4[%c200, %c0_92] : memref<256x128xbf16, #tpu.memory_space<vmem>>, vector<8x128xbf16>
    tpu.vector_store %arg4[%c200, %c0_92], %84 {strides = array<i32>} : memref<256x128xbf16, #tpu.memory_space<vmem>>, vector<8x128xbf16>,
    %c0_93 = arith.constant 0 : index
    %c0_94 = arith.constant 0 : index
    %c52 = arith.constant 52 : index
    %86 = vector.load %arg1[%c0_93, %c0_94, %c52] : memref<1x8x188xbf16, #tpu.memory_space<vmem>>, vector<1x8x128xbf16>
    %87 = vector.shape_cast %86 : vector<1x8x128xbf16> to vector<8x128xbf16>
    %c208 = arith.constant 208 : index
    %c0_95 = arith.constant 0 : index
    %88 = vector.load %arg4[%c208, %c0_95] : memref<256x128xbf16, #tpu.memory_space<vmem>>, vector<8x128xbf16>
    tpu.vector_store %arg4[%c208, %c0_95], %87 {strides = array<i32>} : memref<256x128xbf16, #tpu.memory_space<vmem>>, vector<8x128xbf16>,
    %c0_96 = arith.constant 0 : index
    %c0_97 = arith.constant 0 : index
    %c54 = arith.constant 54 : index
    %89 = vector.load %arg1[%c0_96, %c0_97, %c54] : memref<1x8x188xbf16, #tpu.memory_space<vmem>>, vector<1x8x128xbf16>
    %90 = vector.shape_cast %89 : vector<1x8x128xbf16> to vector<8x128xbf16>
    %c216 = arith.constant 216 : index
    %c0_98 = arith.constant 0 : index
    %91 = vector.load %arg4[%c216, %c0_98] : memref<256x128xbf16, #tpu.memory_space<vmem>>, vector<8x128xbf16>
    tpu.vector_store %arg4[%c216, %c0_98], %90 {strides = array<i32>} : memref<256x128xbf16, #tpu.memory_space<vmem>>, vector<8x128xbf16>,
    %c0_99 = arith.constant 0 : index
    %c0_100 = arith.constant 0 : index
    %c56_101 = arith.constant 56 : index
    %92 = vector.load %arg1[%c0_99, %c0_100, %c56_101] : memref<1x8x188xbf16, #tpu.memory_space<vmem>>, vector<1x8x128xbf16>
    %93 = vector.shape_cast %92 : vector<1x8x128xbf16> to vector<8x128xbf16>
    %c224 = arith.constant 224 : index
    %c0_102 = arith.constant 0 : index
    %94 = vector.load %arg4[%c224, %c0_102] : memref<256x128xbf16, #tpu.memory_space<vmem>>, vector<8x128xbf16>
    tpu.vector_store %arg4[%c224, %c0_102], %93 {strides = array<i32>} : memref<256x128xbf16, #tpu.memory_space<vmem>>, vector<8x128xbf16>,
    %c0_103 = arith.constant 0 : index
    %c0_104 = arith.constant 0 : index
    %c58 = arith.constant 58 : index
    %95 = vector.load %arg1[%c0_103, %c0_104, %c58] : memref<1x8x188xbf16, #tpu.memory_space<vmem>>, vector<1x8x128xbf16>
    %96 = vector.shape_cast %95 : vector<1x8x128xbf16> to vector<8x128xbf16>
    %c232 = arith.constant 232 : index
    %c0_105 = arith.constant 0 : index
    %97 = vector.load %arg4[%c232, %c0_105] : memref<256x128xbf16, #tpu.memory_space<vmem>>, vector<8x128xbf16>
    tpu.vector_store %arg4[%c232, %c0_105], %96 {strides = array<i32>} : memref<256x128xbf16, #tpu.memory_space<vmem>>, vector<8x128xbf16>,
    %c0_106 = arith.constant 0 : index
    %c0_107 = arith.constant 0 : index
    %c60 = arith.constant 60 : index
    %98 = vector.load %arg1[%c0_106, %c0_107, %c60] : memref<1x8x188xbf16, #tpu.memory_space<vmem>>, vector<1x8x128xbf16>
    %99 = vector.shape_cast %98 : vector<1x8x128xbf16> to vector<8x128xbf16>
    %c240 = arith.constant 240 : index
    %c0_108 = arith.constant 0 : index
    %100 = vector.load %arg4[%c240, %c0_108] : memref<256x128xbf16, #tpu.memory_space<vmem>>, vector<8x128xbf16>
    tpu.vector_store %arg4[%c240, %c0_108], %99 {strides = array<i32>} : memref<256x128xbf16, #tpu.memory_space<vmem>>, vector<8x128xbf16>,
    %c0_109 = arith.constant 0 : index
    %c0_110 = arith.constant 0 : index
    %101 = vector.load %arg4[%c0_109, %c0_110] : memref<256x128xbf16, #tpu.memory_space<vmem>>, vector<256x128xbf16>
    %cst_111 = arith.constant dense<0.000000e+00> : vector<8x128xf32>
    %102 = tpu.matmul %7, %101, %cst_111 {dimension_numbers = #tpu.dot_dimension_numbers<[1], [0], [0], [1], [0, 0, 1, 1], [], []>} : vector<8x256xbf16>, vector<256x128xbf16>, vector<8x128xf32> -> vector<8x128xf32>
    %103 = arith.truncf %102 : vector<8x128xf32> to vector<8x128xbf16>
    %c0_112 = arith.constant 0 : index
    %c30_113 = arith.constant 30 : index
    %104 = vector.load %arg5[%c0_112, %c30_113] : memref<8x188xbf16, #tpu.memory_space<vmem>>, vector<8x128xbf16>
    tpu.vector_store %arg5[%c0_112, %c30_113], %103 {strides = array<i32>} : memref<8x188xbf16, #tpu.memory_space<vmem>>, vector<8x128xbf16>,
    %c0_114 = arith.constant 0 : index
    %c0_115 = arith.constant 0 : index
    %105 = vector.load %arg5[%c0_114, %c0_115] : memref<8x188xbf16, #tpu.memory_space<vmem>>, vector<8x128xbf16>
    %c0_116 = arith.constant 0 : index
    %c0_117 = arith.constant 0 : index
    %106 = vector.load %arg4[%c0_116, %c0_117] : memref<256x128xbf16, #tpu.memory_space<vmem>>, vector<8x128xbf16>
    tpu.vector_store %arg4[%c0_116, %c0_117], %105 {strides = array<i32>} : memref<256x128xbf16, #tpu.memory_space<vmem>>, vector<8x128xbf16>,
    %c0_118 = arith.constant 0 : index
    %c2_119 = arith.constant 2 : index
    %107 = vector.load %arg5[%c0_118, %c2_119] : memref<8x188xbf16, #tpu.memory_space<vmem>>, vector<8x128xbf16>
    %c8_120 = arith.constant 8 : index
    %c0_121 = arith.constant 0 : index
    %108 = vector.load %arg4[%c8_120, %c0_121] : memref<256x128xbf16, #tpu.memory_space<vmem>>, vector<8x128xbf16>
    tpu.vector_store %arg4[%c8_120, %c0_121], %107 {strides = array<i32>} : memref<256x128xbf16, #tpu.memory_space<vmem>>, vector<8x128xbf16>,
    %c0_122 = arith.constant 0 : index
    %c4_123 = arith.constant 4 : index
    %109 = vector.load %arg5[%c0_122, %c4_123] : memref<8x188xbf16, #tpu.memory_space<vmem>>, vector<8x128xbf16>
    %c16_124 = arith.constant 16 : index
    %c0_125 = arith.constant 0 : index
    %110 = vector.load %arg4[%c16_124, %c0_125] : memref<256x128xbf16, #tpu.memory_space<vmem>>, vector<8x128xbf16>
    tpu.vector_store %arg4[%c16_124, %c0_125], %109 {strides = array<i32>} : memref<256x128xbf16, #tpu.memory_space<vmem>>, vector<8x128xbf16>,
    %c0_126 = arith.constant 0 : index
    %c6_127 = arith.constant 6 : index
    %111 = vector.load %arg5[%c0_126, %c6_127] : memref<8x188xbf16, #tpu.memory_space<vmem>>, vector<8x128xbf16>
    %c24_128 = arith.constant 24 : index
    %c0_129 = arith.constant 0 : index
    %112 = vector.load %arg4[%c24_128, %c0_129] : memref<256x128xbf16, #tpu.memory_space<vmem>>, vector<8x128xbf16>
    tpu.vector_store %arg4[%c24_128, %c0_129], %111 {strides = array<i32>} : memref<256x128xbf16, #tpu.memory_space<vmem>>, vector<8x128xbf16>,
    %c0_130 = arith.constant 0 : index
    %c8_131 = arith.constant 8 : index
    %113 = vector.load %arg5[%c0_130, %c8_131] : memref<8x188xbf16, #tpu.memory_space<vmem>>, vector<8x128xbf16>
    %c32_132 = arith.constant 32 : index
    %c0_133 = arith.constant 0 : index
    %114 = vector.load %arg4[%c32_132, %c0_133] : memref<256x128xbf16, #tpu.memory_space<vmem>>, vector<8x128xbf16>
    tpu.vector_store %arg4[%c32_132, %c0_133], %113 {strides = array<i32>} : memref<256x128xbf16, #tpu.memory_space<vmem>>, vector<8x128xbf16>,
    %c0_134 = arith.constant 0 : index
    %c10_135 = arith.constant 10 : index
    %115 = vector.load %arg5[%c0_134, %c10_135] : memref<8x188xbf16, #tpu.memory_space<vmem>>, vector<8x128xbf16>
    %c40_136 = arith.constant 40 : index
    %c0_137 = arith.constant 0 : index
    %116 = vector.load %arg4[%c40_136, %c0_137] : memref<256x128xbf16, #tpu.memory_space<vmem>>, vector<8x128xbf16>
    tpu.vector_store %arg4[%c40_136, %c0_137], %115 {strides = array<i32>} : memref<256x128xbf16, #tpu.memory_space<vmem>>, vector<8x128xbf16>,
    %c0_138 = arith.constant 0 : index
    %c12_139 = arith.constant 12 : index
    %117 = vector.load %arg5[%c0_138, %c12_139] : memref<8x188xbf16, #tpu.memory_space<vmem>>, vector<8x128xbf16>
    %c48_140 = arith.constant 48 : index
    %c0_141 = arith.constant 0 : index
    %118 = vector.load %arg4[%c48_140, %c0_141] : memref<256x128xbf16, #tpu.memory_space<vmem>>, vector<8x128xbf16>
    tpu.vector_store %arg4[%c48_140, %c0_141], %117 {strides = array<i32>} : memref<256x128xbf16, #tpu.memory_space<vmem>>, vector<8x128xbf16>,
    %c0_142 = arith.constant 0 : index
    %c14_143 = arith.constant 14 : index
    %119 = vector.load %arg5[%c0_142, %c14_143] : memref<8x188xbf16, #tpu.memory_space<vmem>>, vector<8x128xbf16>
    %c56_144 = arith.constant 56 : index
    %c0_145 = arith.constant 0 : index
    %120 = vector.load %arg4[%c56_144, %c0_145] : memref<256x128xbf16, #tpu.memory_space<vmem>>, vector<8x128xbf16>
    tpu.vector_store %arg4[%c56_144, %c0_145], %119 {strides = array<i32>} : memref<256x128xbf16, #tpu.memory_space<vmem>>, vector<8x128xbf16>,
    %c0_146 = arith.constant 0 : index
    %c16_147 = arith.constant 16 : index
    %121 = vector.load %arg5[%c0_146, %c16_147] : memref<8x188xbf16, #tpu.memory_space<vmem>>, vector<8x128xbf16>
    %c64_148 = arith.constant 64 : index
    %c0_149 = arith.constant 0 : index
    %122 = vector.load %arg4[%c64_148, %c0_149] : memref<256x128xbf16, #tpu.memory_space<vmem>>, vector<8x128xbf16>
    tpu.vector_store %arg4[%c64_148, %c0_149], %121 {strides = array<i32>} : memref<256x128xbf16, #tpu.memory_space<vmem>>, vector<8x128xbf16>,
    %c0_150 = arith.constant 0 : index
    %c18_151 = arith.constant 18 : index
    %123 = vector.load %arg5[%c0_150, %c18_151] : memref<8x188xbf16, #tpu.memory_space<vmem>>, vector<8x128xbf16>
    %c72_152 = arith.constant 72 : index
    %c0_153 = arith.constant 0 : index
    %124 = vector.load %arg4[%c72_152, %c0_153] : memref<256x128xbf16, #tpu.memory_space<vmem>>, vector<8x128xbf16>
    tpu.vector_store %arg4[%c72_152, %c0_153], %123 {strides = array<i32>} : memref<256x128xbf16, #tpu.memory_space<vmem>>, vector<8x128xbf16>,
    %c0_154 = arith.constant 0 : index
    %c20_155 = arith.constant 20 : index
    %125 = vector.load %arg5[%c0_154, %c20_155] : memref<8x188xbf16, #tpu.memory_space<vmem>>, vector<8x128xbf16>
    %c80_156 = arith.constant 80 : index
    %c0_157 = arith.constant 0 : index
    %126 = vector.load %arg4[%c80_156, %c0_157] : memref<256x128xbf16, #tpu.memory_space<vmem>>, vector<8x128xbf16>
    tpu.vector_store %arg4[%c80_156, %c0_157], %125 {strides = array<i32>} : memref<256x128xbf16, #tpu.memory_space<vmem>>, vector<8x128xbf16>,
    %c0_158 = arith.constant 0 : index
    %c22_159 = arith.constant 22 : index
    %127 = vector.load %arg5[%c0_158, %c22_159] : memref<8x188xbf16, #tpu.memory_space<vmem>>, vector<8x128xbf16>
    %c88_160 = arith.constant 88 : index
    %c0_161 = arith.constant 0 : index
    %128 = vector.load %arg4[%c88_160, %c0_161] : memref<256x128xbf16, #tpu.memory_space<vmem>>, vector<8x128xbf16>
    tpu.vector_store %arg4[%c88_160, %c0_161], %127 {strides = array<i32>} : memref<256x128xbf16, #tpu.memory_space<vmem>>, vector<8x128xbf16>,
    %c0_162 = arith.constant 0 : index
    %c24_163 = arith.constant 24 : index
    %129 = vector.load %arg5[%c0_162, %c24_163] : memref<8x188xbf16, #tpu.memory_space<vmem>>, vector<8x128xbf16>
    %c96_164 = arith.constant 96 : index
    %c0_165 = arith.constant 0 : index
    %130 = vector.load %arg4[%c96_164, %c0_165] : memref<256x128xbf16, #tpu.memory_space<vmem>>, vector<8x128xbf16>
    tpu.vector_store %arg4[%c96_164, %c0_165], %129 {strides = array<i32>} : memref<256x128xbf16, #tpu.memory_space<vmem>>, vector<8x128xbf16>,
    %c0_166 = arith.constant 0 : index
    %c26_167 = arith.constant 26 : index
    %131 = vector.load %arg5[%c0_166, %c26_167] : memref<8x188xbf16, #tpu.memory_space<vmem>>, vector<8x128xbf16>
    %c104_168 = arith.constant 104 : index
    %c0_169 = arith.constant 0 : index
    %132 = vector.load %arg4[%c104_168, %c0_169] : memref<256x128xbf16, #tpu.memory_space<vmem>>, vector<8x128xbf16>
    tpu.vector_store %arg4[%c104_168, %c0_169], %131 {strides = array<i32>} : memref<256x128xbf16, #tpu.memory_space<vmem>>, vector<8x128xbf16>,
    %c0_170 = arith.constant 0 : index
    %c28_171 = arith.constant 28 : index
    %133 = vector.load %arg5[%c0_170, %c28_171] : memref<8x188xbf16, #tpu.memory_space<vmem>>, vector<8x128xbf16>
    %c112_172 = arith.constant 112 : index
    %c0_173 = arith.constant 0 : index
    %134 = vector.load %arg4[%c112_172, %c0_173] : memref<256x128xbf16, #tpu.memory_space<vmem>>, vector<8x128xbf16>
    tpu.vector_store %arg4[%c112_172, %c0_173], %133 {strides = array<i32>} : memref<256x128xbf16, #tpu.memory_space<vmem>>, vector<8x128xbf16>,
    %c0_174 = arith.constant 0 : index
    %c30_175 = arith.constant 30 : index
    %135 = vector.load %arg5[%c0_174, %c30_175] : memref<8x188xbf16, #tpu.memory_space<vmem>>, vector<8x128xbf16>
    %c120_176 = arith.constant 120 : index
    %c0_177 = arith.constant 0 : index
    %136 = vector.load %arg4[%c120_176, %c0_177] : memref<256x128xbf16, #tpu.memory_space<vmem>>, vector<8x128xbf16>
    tpu.vector_store %arg4[%c120_176, %c0_177], %135 {strides = array<i32>} : memref<256x128xbf16, #tpu.memory_space<vmem>>, vector<8x128xbf16>,
    %c0_178 = arith.constant 0 : index
    %c32_179 = arith.constant 32 : index
    %137 = vector.load %arg5[%c0_178, %c32_179] : memref<8x188xbf16, #tpu.memory_space<vmem>>, vector<8x128xbf16>
    %c128_180 = arith.constant 128 : index
    %c0_181 = arith.constant 0 : index
    %138 = vector.load %arg4[%c128_180, %c0_181] : memref<256x128xbf16, #tpu.memory_space<vmem>>, vector<8x128xbf16>
    tpu.vector_store %arg4[%c128_180, %c0_181], %137 {strides = array<i32>} : memref<256x128xbf16, #tpu.memory_space<vmem>>, vector<8x128xbf16>,
    %c0_182 = arith.constant 0 : index
    %c34_183 = arith.constant 34 : index
    %139 = vector.load %arg5[%c0_182, %c34_183] : memref<8x188xbf16, #tpu.memory_space<vmem>>, vector<8x128xbf16>
    %c136_184 = arith.constant 136 : index
    %c0_185 = arith.constant 0 : index
    %140 = vector.load %arg4[%c136_184, %c0_185] : memref<256x128xbf16, #tpu.memory_space<vmem>>, vector<8x128xbf16>
    tpu.vector_store %arg4[%c136_184, %c0_185], %139 {strides = array<i32>} : memref<256x128xbf16, #tpu.memory_space<vmem>>, vector<8x128xbf16>,
    %c0_186 = arith.constant 0 : index
    %c36_187 = arith.constant 36 : index
    %141 = vector.load %arg5[%c0_186, %c36_187] : memref<8x188xbf16, #tpu.memory_space<vmem>>, vector<8x128xbf16>
    %c144_188 = arith.constant 144 : index
    %c0_189 = arith.constant 0 : index
    %142 = vector.load %arg4[%c144_188, %c0_189] : memref<256x128xbf16, #tpu.memory_space<vmem>>, vector<8x128xbf16>
    tpu.vector_store %arg4[%c144_188, %c0_189], %141 {strides = array<i32>} : memref<256x128xbf16, #tpu.memory_space<vmem>>, vector<8x128xbf16>,
    %c0_190 = arith.constant 0 : index
    %c38_191 = arith.constant 38 : index
    %143 = vector.load %arg5[%c0_190, %c38_191] : memref<8x188xbf16, #tpu.memory_space<vmem>>, vector<8x128xbf16>
    %c152_192 = arith.constant 152 : index
    %c0_193 = arith.constant 0 : index
    %144 = vector.load %arg4[%c152_192, %c0_193] : memref<256x128xbf16, #tpu.memory_space<vmem>>, vector<8x128xbf16>
    tpu.vector_store %arg4[%c152_192, %c0_193], %143 {strides = array<i32>} : memref<256x128xbf16, #tpu.memory_space<vmem>>, vector<8x128xbf16>,
    %c0_194 = arith.constant 0 : index
    %c40_195 = arith.constant 40 : index
    %145 = vector.load %arg5[%c0_194, %c40_195] : memref<8x188xbf16, #tpu.memory_space<vmem>>, vector<8x128xbf16>
    %c160_196 = arith.constant 160 : index
    %c0_197 = arith.constant 0 : index
    %146 = vector.load %arg4[%c160_196, %c0_197] : memref<256x128xbf16, #tpu.memory_space<vmem>>, vector<8x128xbf16>
    tpu.vector_store %arg4[%c160_196, %c0_197], %145 {strides = array<i32>} : memref<256x128xbf16, #tpu.memory_space<vmem>>, vector<8x128xbf16>,
    %c0_198 = arith.constant 0 : index
    %c42_199 = arith.constant 42 : index
    %147 = vector.load %arg5[%c0_198, %c42_199] : memref<8x188xbf16, #tpu.memory_space<vmem>>, vector<8x128xbf16>
    %c168_200 = arith.constant 168 : index
    %c0_201 = arith.constant 0 : index
    %148 = vector.load %arg4[%c168_200, %c0_201] : memref<256x128xbf16, #tpu.memory_space<vmem>>, vector<8x128xbf16>
    tpu.vector_store %arg4[%c168_200, %c0_201], %147 {strides = array<i32>} : memref<256x128xbf16, #tpu.memory_space<vmem>>, vector<8x128xbf16>,
    %c0_202 = arith.constant 0 : index
    %c44_203 = arith.constant 44 : index
    %149 = vector.load %arg5[%c0_202, %c44_203] : memref<8x188xbf16, #tpu.memory_space<vmem>>, vector<8x128xbf16>
    %c176_204 = arith.constant 176 : index
    %c0_205 = arith.constant 0 : index
    %150 = vector.load %arg4[%c176_204, %c0_205] : memref<256x128xbf16, #tpu.memory_space<vmem>>, vector<8x128xbf16>
    tpu.vector_store %arg4[%c176_204, %c0_205], %149 {strides = array<i32>} : memref<256x128xbf16, #tpu.memory_space<vmem>>, vector<8x128xbf16>,
    %c0_206 = arith.constant 0 : index
    %c46_207 = arith.constant 46 : index
    %151 = vector.load %arg5[%c0_206, %c46_207] : memref<8x188xbf16, #tpu.memory_space<vmem>>, vector<8x128xbf16>
    %c184_208 = arith.constant 184 : index
    %c0_209 = arith.constant 0 : index
    %152 = vector.load %arg4[%c184_208, %c0_209] : memref<256x128xbf16, #tpu.memory_space<vmem>>, vector<8x128xbf16>
    tpu.vector_store %arg4[%c184_208, %c0_209], %151 {strides = array<i32>} : memref<256x128xbf16, #tpu.memory_space<vmem>>, vector<8x128xbf16>,
    %c0_210 = arith.constant 0 : index
    %c48_211 = arith.constant 48 : index
    %153 = vector.load %arg5[%c0_210, %c48_211] : memref<8x188xbf16, #tpu.memory_space<vmem>>, vector<8x128xbf16>
    %c192_212 = arith.constant 192 : index
    %c0_213 = arith.constant 0 : index
    %154 = vector.load %arg4[%c192_212, %c0_213] : memref<256x128xbf16, #tpu.memory_space<vmem>>, vector<8x128xbf16>
    tpu.vector_store %arg4[%c192_212, %c0_213], %153 {strides = array<i32>} : memref<256x128xbf16, #tpu.memory_space<vmem>>, vector<8x128xbf16>,
    %c0_214 = arith.constant 0 : index
    %c50_215 = arith.constant 50 : index
    %155 = vector.load %arg5[%c0_214, %c50_215] : memref<8x188xbf16, #tpu.memory_space<vmem>>, vector<8x128xbf16>
    %c200_216 = arith.constant 200 : index
    %c0_217 = arith.constant 0 : index
    %156 = vector.load %arg4[%c200_216, %c0_217] : memref<256x128xbf16, #tpu.memory_space<vmem>>, vector<8x128xbf16>
    tpu.vector_store %arg4[%c200_216, %c0_217], %155 {strides = array<i32>} : memref<256x128xbf16, #tpu.memory_space<vmem>>, vector<8x128xbf16>,
    %c0_218 = arith.constant 0 : index
    %c52_219 = arith.constant 52 : index
    %157 = vector.load %arg5[%c0_218, %c52_219] : memref<8x188xbf16, #tpu.memory_space<vmem>>, vector<8x128xbf16>
    %c208_220 = arith.constant 208 : index
    %c0_221 = arith.constant 0 : index
    %158 = vector.load %arg4[%c208_220, %c0_221] : memref<256x128xbf16, #tpu.memory_space<vmem>>, vector<8x128xbf16>
    tpu.vector_store %arg4[%c208_220, %c0_221], %157 {strides = array<i32>} : memref<256x128xbf16, #tpu.memory_space<vmem>>, vector<8x128xbf16>,
    %c0_222 = arith.constant 0 : index
    %c54_223 = arith.constant 54 : index
    %159 = vector.load %arg5[%c0_222, %c54_223] : memref<8x188xbf16, #tpu.memory_space<vmem>>, vector<8x128xbf16>
    %c216_224 = arith.constant 216 : index
    %c0_225 = arith.constant 0 : index
    %160 = vector.load %arg4[%c216_224, %c0_225] : memref<256x128xbf16, #tpu.memory_space<vmem>>, vector<8x128xbf16>
    tpu.vector_store %arg4[%c216_224, %c0_225], %159 {strides = array<i32>} : memref<256x128xbf16, #tpu.memory_space<vmem>>, vector<8x128xbf16>,
    %c0_226 = arith.constant 0 : index
    %c56_227 = arith.constant 56 : index
    %161 = vector.load %arg5[%c0_226, %c56_227] : memref<8x188xbf16, #tpu.memory_space<vmem>>, vector<8x128xbf16>
    %c224_228 = arith.constant 224 : index
    %c0_229 = arith.constant 0 : index
    %162 = vector.load %arg4[%c224_228, %c0_229] : memref<256x128xbf16, #tpu.memory_space<vmem>>, vector<8x128xbf16>
    tpu.vector_store %arg4[%c224_228, %c0_229], %161 {strides = array<i32>} : memref<256x128xbf16, #tpu.memory_space<vmem>>, vector<8x128xbf16>,
    %c0_230 = arith.constant 0 : index
    %c58_231 = arith.constant 58 : index
    %163 = vector.load %arg5[%c0_230, %c58_231] : memref<8x188xbf16, #tpu.memory_space<vmem>>, vector<8x128xbf16>
    %c232_232 = arith.constant 232 : index
    %c0_233 = arith.constant 0 : index
    %164 = vector.load %arg4[%c232_232, %c0_233] : memref<256x128xbf16, #tpu.memory_space<vmem>>, vector<8x128xbf16>
    tpu.vector_store %arg4[%c232_232, %c0_233], %163 {strides = array<i32>} : memref<256x128xbf16, #tpu.memory_space<vmem>>, vector<8x128xbf16>,
    %c0_234 = arith.constant 0 : index
    %c60_235 = arith.constant 60 : index
    %165 = vector.load %arg5[%c0_234, %c60_235] : memref<8x188xbf16, #tpu.memory_space<vmem>>, vector<8x128xbf16>
    %c240_236 = arith.constant 240 : index
    %c0_237 = arith.constant 0 : index
    %166 = vector.load %arg4[%c240_236, %c0_237] : memref<256x128xbf16, #tpu.memory_space<vmem>>, vector<8x128xbf16>
    tpu.vector_store %arg4[%c240_236, %c0_237], %165 {strides = array<i32>} : memref<256x128xbf16, #tpu.memory_space<vmem>>, vector<8x128xbf16>,
    %c0_238 = arith.constant 0 : index
    %c0_239 = arith.constant 0 : index
    %167 = vector.load %arg4[%c0_238, %c0_239] : memref<256x128xbf16, #tpu.memory_space<vmem>>, vector<256x128xbf16>
    %cst_240 = arith.constant dense<0.000000e+00> : vector<8x128xf32>
    %168 = tpu.matmul %7, %167, %cst_240 {dimension_numbers = #tpu.dot_dimension_numbers<[1], [0], [0], [1], [0, 0, 1, 1], [], []>} : vector<8x256xbf16>, vector<256x128xbf16>, vector<8x128xf32> -> vector<8x128xf32>
    %c0_241 = arith.constant 0 : index
    %c0_242 = arith.constant 0 : index
    %c0_243 = arith.constant 0 : index
    %169 = vector.load %arg3[%c0_241, %c0_242, %c0_243] : memref<1x8x128xf32, #tpu.memory_space<vmem>>, vector<1x8x128xf32>
    %170 = vector.shape_cast %169 : vector<1x8x128xf32> to vector<8x128xf32>
    %171 = vector.shape_cast %168 : vector<8x128xf32> to vector<1x8x128xf32>
    tpu.vector_store %arg3[%c0_241, %c0_242, %c0_243], %171 {strides = array<i32>} : memref<1x8x128xf32, #tpu.memory_space<vmem>>, vector<1x8x128xf32>,
    return
  }
  func.func @transform_0(%arg0: i32) -> (i32, i32, i32) {
    %c0_i32 = arith.constant 0 : i32
    %c0_i32_0 = arith.constant 0 : i32
    %c0_i32_1 = arith.constant 0 : i32
    return %arg0, %c0_i32, %c0_i32_0 : i32, i32, i32
  }
  func.func @transform_1(%arg0: i32) -> (i32, i32) {
    %c0_i32 = arith.constant 0 : i32
    %c0_i32_0 = arith.constant 0 : i32
    %c0_i32_1 = arith.constant 0 : i32
    return %c0_i32, %c0_i32_0 : i32, i32
  }
  func.func @transform_2(%arg0: i32) -> (i32, i32, i32) {
    %c0_i32 = arith.constant 0 : i32
    %c0_i32_0 = arith.constant 0 : i32
    %c0_i32_1 = arith.constant 0 : i32
    return %arg0, %c0_i32, %c0_i32_0 : i32, i32, i32
  }
}

</mosaic_0001>

<llo_original>
// kernel: tpu_custom_call.1
$region0: #{tpu_custom_call.1}
  #allocation0 [shape = 'u32[]', space=smem, size = 0x4, offset = 0x4, fixed_abs, tag = 'smem constant byte address 0x4 - core index']
  #allocation1 [shape = 'u32[72,128]{1,0:T(1,128)}', space=vmem, size = 0x9000, scoped, tag = 'internal scratch']
  #allocation2 [shape = 'bf16[256,128]{1,0:T(8,128)(2,1)}', space=vmem, size = 0x10000, scoped, tag = 'scratch operand']
  #allocation3 [shape = 'bf16[8,188]{1,0:T(8,128)(2,1)}', space=vmem, size = 0x1000, scoped, tag = 'scratch operand']
  %s0 = inlined_call_operand.hbm [shape: bf16[1,8,188], index: 0, kind: input, shape index: {}]
  %s1 = inlined_call_operand.hbm [shape: bf16[8,256], index: 1, kind: input, shape index: {}]
  %s2 = inlined_call_operand.hbm [shape: f32[1,8,128], index: 2, kind: output, shape index: {}]
  %s3 = sld [smem:[#allocation0]]
  $region26: #{tpu_custom_call.1} parent=0
    _
  %s5 = ssub.s32 1, %s3
  %s6 = scalar_select 0, %s5, %s3
  $region1: #{tpu_custom_call.1} parent=0
    #allocation4 [shape = 'u8[4096]{0}', space=vmem, size = 0x1000, scoped, tag = 'input window, operand 0, single buffered']
    #allocation5 [shape = 's32[1]{0}', space=sflag, size = 0x4, scoped, tag = 'scoped memory for tpu_custom_call.1']
    #allocation6 [shape = 's32[1]{0}', space=sflag, size = 0x4, scoped, tag = 'scoped memory for tpu_custom_call.1']
    #allocation7 [shape = 'u8[4096]{0}', space=vmem, size = 0x1000, scoped, tag = 'input window, operand 1, single buffered']
    #allocation8 [shape = 's32[1]{0}', space=sflag, size = 0x4, scoped, tag = 'scoped memory for tpu_custom_call.1']
    #allocation9 [shape = 'u8[4096]{0}', space=vmem, size = 0x1000, scoped, tag = 'output window, operand 0, single buffered']
    %7 = vsyncpa [#allocation5], 0
    %8 = vsyncpa [#allocation8], 0
    %9 = vsyncpa [#allocation6], 0
    // Predicated region
    $region2: #{tpu_custom_call.1} parent=1 // pred_check
      _
    $region3: #{tpu_custom_call.1} parent=1 // pred_check_branch
      %11 = sbr.rel (0) target = $region5
    $region4: #{tpu_custom_call.1} parent=1 // pred_region
      %13 = vsyncadd [#allocation5], 0
      %s15 = sshll.u32 %s0, 4
      %s16 = int_to_ptr.hbm [resolvable:$true] %s15
      %s17 = sshll.u32 [#allocation4], 4
      %s18 = int_to_ptr.vmem [resolvable:$true] %s17
      %20 = dma.hbm_to_vmem [thread:$0]  %s16, 128, %s18, [#allocation5]
    $region5: #{tpu_custom_call.1} parent=1 // pred_fallthru
      _
    // Predicated region
    $region6: #{tpu_custom_call.1} parent=1 // pred_check
      _
    $region7: #{tpu_custom_call.1} parent=1 // pred_check_branch
      %22 = sbr.rel (0) target = $region9
    $region8: #{tpu_custom_call.1} parent=1 // pred_region
      %24 = vsyncadd [#allocation8], 0
      %s26 = sshll.u32 %s1, 4
      %s27 = int_to_ptr.hbm [resolvable:$true] %s26
      %s28 = sshll.u32 [#allocation7], 4
      %s29 = int_to_ptr.vmem [resolvable:$true] %s28
      %31 = dma.hbm_to_vmem [thread:$0]  %s27, 128, %s29, [#allocation8]
    $region9: #{tpu_custom_call.1} parent=1 // pred_fallthru
      _
    // Predicated region
    $region10: #{tpu_custom_call.1} parent=1 // pred_check
      _
    $region11: #{tpu_custom_call.1} parent=1 // pred_check_branch
      %33 = sbr.rel (0) target = $region13
    $region12: #{tpu_custom_call.1} parent=1 // pred_region
      %35 = dma.done [#allocation5], 128
    $region13: #{tpu_custom_call.1} parent=1 // pred_fallthru
      _
    // Predicated region
    $region14: #{tpu_custom_call.1} parent=1 // pred_check
      _
    $region15: #{tpu_custom_call.1} parent=1 // pred_check_branch
      %37 = sbr.rel (0) target = $region17
    $region16: #{tpu_custom_call.1} parent=1 // pred_region
      %39 = dma.done [#allocation8], 128
    $region17: #{tpu_custom_call.1} parent=1 // pred_fallthru
      _
    %vm42 = vcmask 1040384
    %vm43 = vsmask.f32 256
    %vm44 = vmand %vm42, %vm43
    %v45 = vsel %vm44, 1065369472, 0
    %46 = vst [vmem:[#allocation2 + $0x7c] sm:$0xf] %v45
    %vm47 = vcmask 240640
    %48 = vst.msk [vmem:[#allocation3] sm:$0xf] %vm47, 0
    %vm49 = vcmask 486640
    %50 = vst.msk [vmem:[#allocation3 + $0x4] sm:$0xf] %vm49, 0
    %v51 = vld [vmem:[#allocation7] sm:$0xff]
    %v52 = vld [vmem:[#allocation4] sm:$0xf]
    %53 = vst [vmem:[#allocation2] sm:$0xf] %v52
    %v54 = vld [vmem:[#allocation4] sm:$0xff]
    %56 = vrot.lane.b32.xlu0 %v54, 126
    %v57 = vpop.permute.xlu0 %56
    %v58 = vrot.slane %v57, 4
    %vm59 = vcmask 1031168
    %v60 = vsel %vm59, %v57, %v58
    %62 = vst [vmem:[#allocation2 + $0x4] sm:$0xf] %v60
    %v63 = vld [vmem:[#allocation4] sm:$0xff]
    %65 = vrot.lane.b32.xlu0 %v63, 124
    %v66 = vpop.permute.xlu0 %65
    %v67 = vrot.slane %v66, 4
    %vm68 = vcmask 1014784
    %v69 = vsel %vm68, %v66, %v67
    %71 = vst [vmem:[#allocation2 + $0x8] sm:$0xf] %v69
    %v72 = vld [vmem:[#allocation4] sm:$0xff]
    %74 = vrot.lane.b32.xlu0 %v72, 122
    %v75 = vpop.permute.xlu0 %74
    %v76 = vrot.slane %v75, 4
    %vm77 = vcmask 998400
    %v78 = vsel %vm77, %v75, %v76
    %80 = vst [vmem:[#allocation2 + $0xc] sm:$0xf] %v78
    %v81 = vld [vmem:[#allocation4] sm:$0xff]
    %83 = vrot.lane.b32.xlu0 %v81, 120
    %v84 = vpop.permute.xlu0 %83
    %v85 = vrot.slane %v84, 4
    %vm86 = vcmask 982016
    %v87 = vsel %vm86, %v84, %v85
    %89 = vst [vmem:[#allocation2 + $0x10] sm:$0xf] %v87
    %v90 = vld [vmem:[#allocation4] sm:$0xff]
    %92 = vrot.lane.b32.xlu0 %v90, 118
    %v93 = vpop.permute.xlu0 %92
    %v94 = vrot.slane %v93, 4
    %vm95 = vcmask 965632
    %v96 = vsel %vm95, %v93, %v94
    %98 = vst [vmem:[#allocation2 + $0x14] sm:$0xf] %v96
    %v99 = vld [vmem:[#allocation4] sm:$0xff]
    %101 = vrot.lane.b32.xlu0 %v99, 116
    %v102 = vpop.permute.xlu0 %101
    %v103 = vrot.slane %v102, 4
    %vm104 = vcmask 949248
    %v105 = vsel %vm104, %v102, %v103
    %107 = vst [vmem:[#allocation2 + $0x18] sm:$0xf] %v105
    %v108 = vld [vmem:[#allocation4] sm:$0xff]
    %110 = vrot.lane.b32.xlu0 %v108, 114
    %v111 = vpop.permute.xlu0 %110
    %v112 = vrot.slane %v111, 4
    %vm113 = vcmask 932864
    %v114 = vsel %vm113, %v111, %v112
    %116 = vst [vmem:[#allocation2 + $0x1c] sm:$0xf] %v114
    %v117 = vld [vmem:[#allocation4] sm:$0xff]
    %119 = vrot.lane.b32.xlu0 %v117, 112
    %v120 = vpop.permute.xlu0 %119
    %v121 = vrot.slane %v120, 4
    %vm122 = vcmask 916480
    %v123 = vsel %vm122, %v120, %v121
    %125 = vst [vmem:[#allocation2 + $0x20] sm:$0xf] %v123
    %v126 = vld [vmem:[#allocation4] sm:$0xff]
    %128 = vrot.lane.b32.xlu0 %v126, 110
    %v129 = vpop.permute.xlu0 %128
    %v130 = vrot.slane %v129, 4
    %vm131 = vcmask 900096
    %v132 = vsel %vm131, %v129, %v130
    %134 = vst [vmem:[#allocation2 + $0x24] sm:$0xf] %v132
    %v135 = vld [vmem:[#allocation4] sm:$0xff]
    %137 = vrot.lane.b32.xlu0 %v135, 108
    %v138 = vpop.permute.xlu0 %137
    %v139 = vrot.slane %v138, 4
    %vm140 = vcmask 883712
    %v141 = vsel %vm140, %v138, %v139
    %143 = vst [vmem:[#allocation2 + $0x28] sm:$0xf] %v141
    %v144 = vld [vmem:[#allocation4] sm:$0xff]
    %146 = vrot.lane.b32.xlu0 %v144, 106
    %v147 = vpop.permute.xlu0 %146
    %v148 = vrot.slane %v147, 4
    %vm149 = vcmask 867328
    %v150 = vsel %vm149, %v147, %v148
    %152 = vst [vmem:[#allocation2 + $0x2c] sm:$0xf] %v150
    %v153 = vld [vmem:[#allocation4] sm:$0xff]
    %155 = vrot.lane.b32.xlu0 %v153, 104
    %v156 = vpop.permute.xlu0 %155
    %v157 = vrot.slane %v156, 4
    %vm158 = vcmask 850944
    %v159 = vsel %vm158, %v156, %v157
    %161 = vst [vmem:[#allocation2 + $0x30] sm:$0xf] %v159
    %v162 = vld [vmem:[#allocation4] sm:$0xff]
    %164 = vrot.lane.b32.xlu0 %v162, 102
    %v165 = vpop.permute.xlu0 %164
    %v166 = vrot.slane %v165, 4
    %vm167 = vcmask 834560
    %v168 = vsel %vm167, %v165, %v166
    %170 = vst [vmem:[#allocation2 + $0x34] sm:$0xf] %v168
    %v171 = vld [vmem:[#allocation4] sm:$0xff]
    %173 = vrot.lane.b32.xlu0 %v171, 100
    %v174 = vpop.permute.xlu0 %173
    %v175 = vrot.slane %v174, 4
    %vm176 = vcmask 818176
    %v177 = vsel %vm176, %v174, %v175
    %179 = vst [vmem:[#allocation2 + $0x38] sm:$0xf] %v177
    %v180 = vld [vmem:[#allocation4] sm:$0xff]
    %182 = vrot.lane.b32.xlu0 %v180, 98
    %v183 = vpop.permute.xlu0 %182
    %v184 = vrot.slane %v183, 4
    %vm185 = vcmask 801792
    %v186 = vsel %vm185, %v183, %v184
    %188 = vst [vmem:[#allocation2 + $0x3c] sm:$0xf] %v186
    %v189 = vld [vmem:[#allocation4] sm:$0xff]
    %191 = vrot.lane.b32.xlu0 %v189, 96
    %v192 = vpop.permute.xlu0 %191
    %v193 = vrot.slane %v192, 4
    %vm194 = vcmask 785408
    %v195 = vsel %vm194, %v192, %v193
    %197 = vst [vmem:[#allocation2 + $0x40] sm:$0xf] %v195
    %v198 = vld [vmem:[#allocation4] sm:$0xff]
    %200 = vrot.lane.b32.xlu0 %v198, 94
    %v201 = vpop.permute.xlu0 %200
    %v202 = vrot.slane %v201, 4
    %vm203 = vcmask 769024
    %v204 = vsel %vm203, %v201, %v202
    %206 = vst [vmem:[#allocation2 + $0x44] sm:$0xf] %v204
    %v207 = vld [vmem:[#allocation4] sm:$0xff]
    %209 = vrot.lane.b32.xlu0 %v207, 92
    %v210 = vpop.permute.xlu0 %209
    %v211 = vrot.slane %v210, 4
    %vm212 = vcmask 752640
    %v213 = vsel %vm212, %v210, %v211
    %215 = vst [vmem:[#allocation2 + $0x48] sm:$0xf] %v213
    %v216 = vld [vmem:[#allocation4] sm:$0xff]
    %218 = vrot.lane.b32.xlu0 %v216, 90
    %v219 = vpop.permute.xlu0 %218
    %v220 = vrot.slane %v219, 4
    %vm221 = vcmask 736256
    %v222 = vsel %vm221, %v219, %v220
    %224 = vst [vmem:[#allocation2 + $0x4c] sm:$0xf] %v222
    %v225 = vld [vmem:[#allocation4] sm:$0xff]
    %227 = vrot.lane.b32.xlu0 %v225, 88
    %v228 = vpop.permute.xlu0 %227
    %v229 = vrot.slane %v228, 4
    %vm230 = vcmask 719872
    %v231 = vsel %vm230, %v228, %v229
    %233 = vst [vmem:[#allocation2 + $0x50] sm:$0xf] %v231
    %v234 = vld [vmem:[#allocation4] sm:$0xff]
    %236 = vrot.lane.b32.xlu0 %v234, 86
    %v237 = vpop.permute.xlu0 %236
    %v238 = vrot.slane %v237, 4
    %vm239 = vcmask 703488
    %v240 = vsel %vm239, %v237, %v238
    %242 = vst [vmem:[#allocation2 + $0x54] sm:$0xf] %v240
    %v243 = vld [vmem:[#allocation4] sm:$0xff]
    %245 = vrot.lane.b32.xlu0 %v243, 84
    %v246 = vpop.permute.xlu0 %245
    %v247 = vrot.slane %v246, 4
    %vm248 = vcmask 687104
    %v249 = vsel %vm248, %v246, %v247
    %251 = vst [vmem:[#allocation2 + $0x58] sm:$0xf] %v249
    %v252 = vld [vmem:[#allocation4] sm:$0xff]
    %254 = vrot.lane.b32.xlu0 %v252, 82
    %v255 = vpop.permute.xlu0 %254
    %v256 = vrot.slane %v255, 4
    %vm257 = vcmask 670720
    %v258 = vsel %vm257, %v255, %v256
    %260 = vst [vmem:[#allocation2 + $0x5c] sm:$0xf] %v258
    %v261 = vld [vmem:[#allocation4] sm:$0xff]
    %263 = vrot.lane.b32.xlu0 %v261, 80
    %v264 = vpop.permute.xlu0 %263
    %v265 = vrot.slane %v264, 4
    %vm266 = vcmask 654336
    %v267 = vsel %vm266, %v264, %v265
    %269 = vst [vmem:[#allocation2 + $0x60] sm:$0xf] %v267
    %v270 = vld [vmem:[#allocation4] sm:$0xff]
    %272 = vrot.lane.b32.xlu0 %v270, 78
    %v273 = vpop.permute.xlu0 %272
    %v274 = vrot.slane %v273, 4
    %vm275 = vcmask 637952
    %v276 = vsel %vm275, %v273, %v274
    %278 = vst [vmem:[#allocation2 + $0x64] sm:$0xf] %v276
    %v279 = vld [vmem:[#allocation4] sm:$0xff]
    %281 = vrot.lane.b32.xlu0 %v279, 76
    %v282 = vpop.permute.xlu0 %281
    %v283 = vrot.slane %v282, 4
    %vm284 = vcmask 621568
    %v285 = vsel %vm284, %v282, %v283
    %287 = vst [vmem:[#allocation2 + $0x68] sm:$0xf] %v285
    %v288 = vld [vmem:[#allocation4] sm:$0xff]
    %290 = vrot.lane.b32.xlu0 %v288, 74
    %v291 = vpop.permute.xlu0 %290
    %v292 = vrot.slane %v291, 4
    %vm293 = vcmask 605184
    %v294 = vsel %vm293, %v291, %v292
    %296 = vst [vmem:[#allocation2 + $0x6c] sm:$0xf] %v294
    %v297 = vld [vmem:[#allocation4] sm:$0xff]
    %299 = vrot.lane.b32.xlu0 %v297, 72
    %v300 = vpop.permute.xlu0 %299
    %v301 = vrot.slane %v300, 4
    %vm302 = vcmask 588800
    %v303 = vsel %vm302, %v300, %v301
    %305 = vst [vmem:[#allocation2 + $0x70] sm:$0xf] %v303
    %v306 = vld [vmem:[#allocation4] sm:$0xff]
    %308 = vrot.lane.b32.xlu0 %v306, 70
    %v309 = vpop.permute.xlu0 %308
    %v310 = vrot.slane %v309, 4
    %vm311 = vcmask 572416
    %v312 = vsel %vm311, %v309, %v310
    %314 = vst [vmem:[#allocation2 + $0x74] sm:$0xf] %v312
    %v315 = vld [vmem:[#allocation4] sm:$0xff]
    %317 = vrot.lane.b32.xlu0 %v315, 68
    %v318 = vpop.permute.xlu0 %317
    %v319 = vrot.slane %v318, 4
    %vm320 = vcmask 556032
    %v321 = vsel %vm320, %v318, %v319
    %323 = vst [vmem:[#allocation2 + $0x78] sm:$0xf] %v321
    %v324 = vld [vmem:[#allocation2] sm:$0xf]
    %v325 = vld [vmem:[#allocation2 + $0x4] sm:$0xf]
    %v326 = vld [vmem:[#allocation2 + $0x8] sm:$0xf]
    %v327 = vld [vmem:[#allocation2 + $0xc] sm:$0xf]
    %v328 = vld [vmem:[#allocation2 + $0x10] sm:$0xf]
    %v329 = vld [vmem:[#allocation2 + $0x14] sm:$0xf]
    %v330 = vld [vmem:[#allocation2 + $0x18] sm:$0xf]
    %v331 = vld [vmem:[#allocation2 + $0x1c] sm:$0xf]
    %v332 = vld [vmem:[#allocation2 + $0x20] sm:$0xf]
    %v333 = vld [vmem:[#allocation2 + $0x24] sm:$0xf]
    %v334 = vld [vmem:[#allocation2 + $0x28] sm:$0xf]
    %v335 = vld [vmem:[#allocation2 + $0x2c] sm:$0xf]
    %v336 = vld [vmem:[#allocation2 + $0x30] sm:$0xf]
    %v337 = vld [vmem:[#allocation2 + $0x34] sm:$0xf]
    %v338 = vld [vmem:[#allocation2 + $0x38] sm:$0xf]
    %v339 = vld [vmem:[#allocation2 + $0x3c] sm:$0xf]
    %v340 = vld [vmem:[#allocation2 + $0x40] sm:$0xf]
    %v341 = vld [vmem:[#allocation2 + $0x44] sm:$0xf]
    %v342 = vld [vmem:[#allocation2 + $0x48] sm:$0xf]
    %v343 = vld [vmem:[#allocation2 + $0x4c] sm:$0xf]
    %v344 = vld [vmem:[#allocation2 + $0x50] sm:$0xf]
    %v345 = vld [vmem:[#allocation2 + $0x54] sm:$0xf]
    %v346 = vld [vmem:[#allocation2 + $0x58] sm:$0xf]
    %v347 = vld [vmem:[#allocation2 + $0x5c] sm:$0xf]
    %v348 = vld [vmem:[#allocation2 + $0x60] sm:$0xf]
    %v349 = vld [vmem:[#allocation2 + $0x64] sm:$0xf]
    %v350 = vld [vmem:[#allocation2 + $0x68] sm:$0xf]
    %v351 = vld [vmem:[#allocation2 + $0x6c] sm:$0xf]
    %v352 = vld [vmem:[#allocation2 + $0x70] sm:$0xf]
    %v353 = vld [vmem:[#allocation2 + $0x74] sm:$0xf]
    %v354 = vld [vmem:[#allocation2 + $0x78] sm:$0xf]
    %v355 = vld [vmem:[#allocation2 + $0x7c] sm:$0xf]
    %v357 = vunpack.c.l.b16 %v51
    %v358 = vunpack.c.h.b16 %v51
    %v359 = vpack.c.b16 %v357, %v357
    %v360 = vpack.c.b16 %v358, %v358
    %v395 = vunpack.c.l.b16 %v324
    %v396 = vunpack.c.l.b16 %v325
    %v397 = vunpack.c.l.b16 %v326
    %v398 = vunpack.c.l.b16 %v327
    %v399 = vunpack.c.l.b16 %v328
    %v400 = vunpack.c.l.b16 %v329
    %v401 = vunpack.c.l.b16 %v330
    %v402 = vunpack.c.l.b16 %v331
    %v403 = vunpack.c.l.b16 %v332
    %v404 = vunpack.c.l.b16 %v333
    %v405 = vunpack.c.l.b16 %v334
    %v406 = vunpack.c.l.b16 %v335
    %v407 = vunpack.c.l.b16 %v336
    %v408 = vunpack.c.l.b16 %v337
    %v409 = vunpack.c.l.b16 %v338
    %v410 = vunpack.c.l.b16 %v339
    %v411 = vunpack.c.l.b16 %v340
    %v412 = vunpack.c.l.b16 %v341
    %v413 = vunpack.c.l.b16 %v342
    %v414 = vunpack.c.l.b16 %v343
    %v415 = vunpack.c.l.b16 %v344
    %v416 = vunpack.c.l.b16 %v345
    %v417 = vunpack.c.l.b16 %v346
    %v418 = vunpack.c.l.b16 %v347
    %v419 = vunpack.c.l.b16 %v348
    %v420 = vunpack.c.l.b16 %v349
    %v421 = vunpack.c.l.b16 %v350
    %v422 = vunpack.c.l.b16 %v351
    %v423 = vunpack.c.l.b16 %v352
    %v424 = vunpack.c.l.b16 %v353
    %v425 = vunpack.c.l.b16 %v354
    %v426 = vunpack.c.l.b16 %v355
    %v427 = vpack.c.b16 %v396, %v395
    %v428 = vpack.c.b16 %v398, %v397
    %v429 = vpack.c.b16 %v400, %v399
    %v430 = vpack.c.b16 %v402, %v401
    %v431 = vpack.c.b16 %v404, %v403
    %v432 = vpack.c.b16 %v406, %v405
    %v433 = vpack.c.b16 %v408, %v407
    %v434 = vpack.c.b16 %v410, %v409
    %v435 = vpack.c.b16 %v412, %v411
    %v436 = vpack.c.b16 %v414, %v413
    %v437 = vpack.c.b16 %v416, %v415
    %v438 = vpack.c.b16 %v418, %v417
    %v439 = vpack.c.b16 %v420, %v419
    %v440 = vpack.c.b16 %v422, %v421
    %v441 = vpack.c.b16 %v424, %v423
    %v442 = vpack.c.b16 %v426, %v425
    %459 = vmatpush.bf16.msra.mxu0 %v434
    %460 = vmatpush.bf16.msra.mxu0 %v433
    %461 = vmatpush.bf16.msra.mxu0 %v432
    %462 = vmatpush.bf16.msra.mxu0 %v431
    %463 = vmatpush.bf16.msra.mxu0 %v430
    %464 = vmatpush.bf16.msra.mxu0 %v429
    %465 = vmatpush.bf16.msra.mxu0 %v428
    %466 = vmatpush.bf16.msra.mxu0 %v427
    %467 = vmatmul.bf16.gmra.mxu0 %v359
    %v468 = vpop.f32.mrf.mxu0
    %v469 = vadd.f32 0.0, %v468
    %v470 = vpop.f32.mrf.mxu0
    %471 = vdwg.mxu0
    %472 = vmatpush.bf16.msra.mxu0 %v442
    %473 = vmatpush.bf16.msra.mxu0 %v441
    %474 = vmatpush.bf16.msra.mxu0 %v440
    %475 = vmatpush.bf16.msra.mxu0 %v439
    %476 = vmatpush.bf16.msra.mxu0 %v438
    %477 = vmatpush.bf16.msra.mxu0 %v437
    %478 = vmatpush.bf16.msra.mxu0 %v436
    %479 = vmatpush.bf16.msra.mxu0 %v435
    %480 = vmatmul.bf16.gmra.mxu0 %v360
    %v481 = vpop.f32.mrf.mxu0
    %v482 = vadd.f32 %v469, %v481
    %v483 = vpop.f32.mrf.mxu0
    %484 = vdwg.mxu0
    %v485 = vpack.c.bf16 %v482, %v482
    %487 = vrot.lane.b32.xlu0 %v485, 30
    %v488 = vpop.permute.xlu0 %487
    %v489 = vrot.slane %v488, 4
    %vm490 = vcmask 244736
    %v491 = vsel %vm490, %v489, %v488
    %vm493 = vcmask 1043696
    %vm494 = vcmask 244740
    %vm495 = vmor %vm494, %vm493
    %496 = vst.msk [vmem:[#allocation3] sm:$0xff] %vm495, %v491
    %v497 = vld [vmem:[#allocation3] sm:$0xf]
    %498 = vst [vmem:[#allocation2] sm:$0xf] %v497
    %v499 = vld [vmem:[#allocation3] sm:$0xff]
    %501 = vrot.lane.b32.xlu0 %v499, 126
    %v502 = vpop.permute.xlu0 %501
    %v503 = vrot.slane %v502, 4
    %v504 = vsel %vm59, %v502, %v503
    %506 = vst [vmem:[#allocation2 + $0x4] sm:$0xf] %v504
    %v507 = vld [vmem:[#allocation3] sm:$0xff]
    %509 = vrot.lane.b32.xlu0 %v507, 124
    %v510 = vpop.permute.xlu0 %509
    %v511 = vrot.slane %v510, 4
    %v512 = vsel %vm68, %v510, %v511
    %514 = vst [vmem:[#allocation2 + $0x8] sm:$0xf] %v512
    %v515 = vld [vmem:[#allocation3] sm:$0xff]
    %517 = vrot.lane.b32.xlu0 %v515, 122
    %v518 = vpop.permute.xlu0 %517
    %v519 = vrot.slane %v518, 4
    %v520 = vsel %vm77, %v518, %v519
    %522 = vst [vmem:[#allocation2 + $0xc] sm:$0xf] %v520
    %v523 = vld [vmem:[#allocation3] sm:$0xff]
    %525 = vrot.lane.b32.xlu0 %v523, 120
    %v526 = vpop.permute.xlu0 %525
    %v527 = vrot.slane %v526, 4
    %v528 = vsel %vm86, %v526, %v527
    %530 = vst [vmem:[#allocation2 + $0x10] sm:$0xf] %v528
    %v531 = vld [vmem:[#allocation3] sm:$0xff]
    %533 = vrot.lane.b32.xlu0 %v531, 118
    %v534 = vpop.permute.xlu0 %533
    %v535 = vrot.slane %v534, 4
    %v536 = vsel %vm95, %v534, %v535
    %538 = vst [vmem:[#allocation2 + $0x14] sm:$0xf] %v536
    %v539 = vld [vmem:[#allocation3] sm:$0xff]
    %541 = vrot.lane.b32.xlu0 %v539, 116
    %v542 = vpop.permute.xlu0 %541
    %v543 = vrot.slane %v542, 4
    %v544 = vsel %vm104, %v542, %v543
    %546 = vst [vmem:[#allocation2 + $0x18] sm:$0xf] %v544
    %v547 = vld [vmem:[#allocation3] sm:$0xff]
    %549 = vrot.lane.b32.xlu0 %v547, 114
    %v550 = vpop.permute.xlu0 %549
    %v551 = vrot.slane %v550, 4
    %v552 = vsel %vm113, %v550, %v551
    %554 = vst [vmem:[#allocation2 + $0x1c] sm:$0xf] %v552
    %v555 = vld [vmem:[#allocation3] sm:$0xff]
    %557 = vrot.lane.b32.xlu0 %v555, 112
    %v558 = vpop.permute.xlu0 %557
    %v559 = vrot.slane %v558, 4
    %v560 = vsel %vm122, %v558, %v559
    %562 = vst [vmem:[#allocation2 + $0x20] sm:$0xf] %v560
    %v563 = vld [vmem:[#allocation3] sm:$0xff]
    %565 = vrot.lane.b32.xlu0 %v563, 110
    %v566 = vpop.permute.xlu0 %565
    %v567 = vrot.slane %v566, 4
    %v568 = vsel %vm131, %v566, %v567
    %570 = vst [vmem:[#allocation2 + $0x24] sm:$0xf] %v568
    %v571 = vld [vmem:[#allocation3] sm:$0xff]
    %573 = vrot.lane.b32.xlu0 %v571, 108
    %v574 = vpop.permute.xlu0 %573
    %v575 = vrot.slane %v574, 4
    %v576 = vsel %vm140, %v574, %v575
    %578 = vst [vmem:[#allocation2 + $0x28] sm:$0xf] %v576
    %v579 = vld [vmem:[#allocation3] sm:$0xff]
    %581 = vrot.lane.b32.xlu0 %v579, 106
    %v582 = vpop.permute.xlu0 %581
    %v583 = vrot.slane %v582, 4
    %v584 = vsel %vm149, %v582, %v583
    %586 = vst [vmem:[#allocation2 + $0x2c] sm:$0xf] %v584
    %v587 = vld [vmem:[#allocation3] sm:$0xff]
    %589 = vrot.lane.b32.xlu0 %v587, 104
    %v590 = vpop.permute.xlu0 %589
    %v591 = vrot.slane %v590, 4
    %v592 = vsel %vm158, %v590, %v591
    %594 = vst [vmem:[#allocation2 + $0x30] sm:$0xf] %v592
    %v595 = vld [vmem:[#allocation3] sm:$0xff]
    %597 = vrot.lane.b32.xlu0 %v595, 102
    %v598 = vpop.permute.xlu0 %597
    %v599 = vrot.slane %v598, 4
    %v600 = vsel %vm167, %v598, %v599
    %602 = vst [vmem:[#allocation2 + $0x34] sm:$0xf] %v600
    %v603 = vld [vmem:[#allocation3] sm:$0xff]
    %605 = vrot.lane.b32.xlu0 %v603, 100
    %v606 = vpop.permute.xlu0 %605
    %v607 = vrot.slane %v606, 4
    %v608 = vsel %vm176, %v606, %v607
    %610 = vst [vmem:[#allocation2 + $0x38] sm:$0xf] %v608
    %v611 = vld [vmem:[#allocation3] sm:$0xff]
    %613 = vrot.lane.b32.xlu0 %v611, 98
    %v614 = vpop.permute.xlu0 %613
    %v615 = vrot.slane %v614, 4
    %v616 = vsel %vm185, %v614, %v615
    %618 = vst [vmem:[#allocation2 + $0x3c] sm:$0xf] %v616
    %v619 = vld [vmem:[#allocation3] sm:$0xff]
    %621 = vrot.lane.b32.xlu0 %v619, 96
    %v622 = vpop.permute.xlu0 %621
    %v623 = vrot.slane %v622, 4
    %v624 = vsel %vm194, %v622, %v623
    %626 = vst [vmem:[#allocation2 + $0x40] sm:$0xf] %v624
    %v627 = vld [vmem:[#allocation3] sm:$0xff]
    %629 = vrot.lane.b32.xlu0 %v627, 94
    %v630 = vpop.permute.xlu0 %629
    %v631 = vrot.slane %v630, 4
    %v632 = vsel %vm203, %v630, %v631
    %634 = vst [vmem:[#allocation2 + $0x44] sm:$0xf] %v632
    %v635 = vld [vmem:[#allocation3] sm:$0xff]
    %637 = vrot.lane.b32.xlu0 %v635, 92
    %v638 = vpop.permute.xlu0 %637
    %v639 = vrot.slane %v638, 4
    %v640 = vsel %vm212, %v638, %v639
    %642 = vst [vmem:[#allocation2 + $0x48] sm:$0xf] %v640
    %v643 = vld [vmem:[#allocation3] sm:$0xff]
    %645 = vrot.lane.b32.xlu0 %v643, 90
    %v646 = vpop.permute.xlu0 %645
    %v647 = vrot.slane %v646, 4
    %v648 = vsel %vm221, %v646, %v647
    %650 = vst [vmem:[#allocation2 + $0x4c] sm:$0xf] %v648
    %v651 = vld [vmem:[#allocation3] sm:$0xff]
    %653 = vrot.lane.b32.xlu0 %v651, 88
    %v654 = vpop.permute.xlu0 %653
    %v655 = vrot.slane %v654, 4
    %v656 = vsel %vm230, %v654, %v655
    %658 = vst [vmem:[#allocation2 + $0x50] sm:$0xf] %v656
    %v659 = vld [vmem:[#allocation3] sm:$0xff]
    %661 = vrot.lane.b32.xlu0 %v659, 86
    %v662 = vpop.permute.xlu0 %661
    %v663 = vrot.slane %v662, 4
    %v664 = vsel %vm239, %v662, %v663
    %666 = vst [vmem:[#allocation2 + $0x54] sm:$0xf] %v664
    %v667 = vld [vmem:[#allocation3] sm:$0xff]
    %669 = vrot.lane.b32.xlu0 %v667, 84
    %v670 = vpop.permute.xlu0 %669
    %v671 = vrot.slane %v670, 4
    %v672 = vsel %vm248, %v670, %v671
    %674 = vst [vmem:[#allocation2 + $0x58] sm:$0xf] %v672
    %v675 = vld [vmem:[#allocation3] sm:$0xff]
    %677 = vrot.lane.b32.xlu0 %v675, 82
    %v678 = vpop.permute.xlu0 %677
    %v679 = vrot.slane %v678, 4
    %v680 = vsel %vm257, %v678, %v679
    %682 = vst [vmem:[#allocation2 + $0x5c] sm:$0xf] %v680
    %v683 = vld [vmem:[#allocation3] sm:$0xff]
    %685 = vrot.lane.b32.xlu0 %v683, 80
    %v686 = vpop.permute.xlu0 %685
    %v687 = vrot.slane %v686, 4
    %v688 = vsel %vm266, %v686, %v687
    %690 = vst [vmem:[#allocation2 + $0x60] sm:$0xf] %v688
    %v691 = vld [vmem:[#allocation3] sm:$0xff]
    %693 = vrot.lane.b32.xlu0 %v691, 78
    %v694 = vpop.permute.xlu0 %693
    %v695 = vrot.slane %v694, 4
    %v696 = vsel %vm275, %v694, %v695
    %698 = vst [vmem:[#allocation2 + $0x64] sm:$0xf] %v696
    %v699 = vld [vmem:[#allocation3] sm:$0xff]
    %701 = vrot.lane.b32.xlu0 %v699, 76
    %v702 = vpop.permute.xlu0 %701
    %v703 = vrot.slane %v702, 4
    %v704 = vsel %vm284, %v702, %v703
    %706 = vst [vmem:[#allocation2 + $0x68] sm:$0xf] %v704
    %v707 = vld [vmem:[#allocation3] sm:$0xff]
    %709 = vrot.lane.b32.xlu0 %v707, 74
    %v710 = vpop.permute.xlu0 %709
    %v711 = vrot.slane %v710, 4
    %v712 = vsel %vm293, %v710, %v711
    %714 = vst [vmem:[#allocation2 + $0x6c] sm:$0xf] %v712
    %v715 = vld [vmem:[#allocation3] sm:$0xff]
    %717 = vrot.lane.b32.xlu0 %v715, 72
    %v718 = vpop.permute.xlu0 %717
    %v719 = vrot.slane %v718, 4
    %v720 = vsel %vm302, %v718, %v719
    %722 = vst [vmem:[#allocation2 + $0x70] sm:$0xf] %v720
    %v723 = vld [vmem:[#allocation3] sm:$0xff]
    %725 = vrot.lane.b32.xlu0 %v723, 70
    %v726 = vpop.permute.xlu0 %725
    %v727 = vrot.slane %v726, 4
    %v728 = vsel %vm311, %v726, %v727
    %730 = vst [vmem:[#allocation2 + $0x74] sm:$0xf] %v728
    %v731 = vld [vmem:[#allocation3] sm:$0xff]
    %733 = vrot.lane.b32.xlu0 %v731, 68
    %v734 = vpop.permute.xlu0 %733
    %v735 = vrot.slane %v734, 4
    %v736 = vsel %vm320, %v734, %v735
    %738 = vst [vmem:[#allocation2 + $0x78] sm:$0xf] %v736
    %v739 = vld [vmem:[#allocation2] sm:$0xf]
    %v740 = vld [vmem:[#allocation2 + $0x4] sm:$0xf]
    %v741 = vld [vmem:[#allocation2 + $0x8] sm:$0xf]
    %v742 = vld [vmem:[#allocation2 + $0xc] sm:$0xf]
    %v743 = vld [vmem:[#allocation2 + $0x10] sm:$0xf]
    %v744 = vld [vmem:[#allocation2 + $0x14] sm:$0xf]
    %v745 = vld [vmem:[#allocation2 + $0x18] sm:$0xf]
    %v746 = vld [vmem:[#allocation2 + $0x1c] sm:$0xf]
    %v747 = vld [vmem:[#allocation2 + $0x20] sm:$0xf]
    %v748 = vld [vmem:[#allocation2 + $0x24] sm:$0xf]
    %v749 = vld [vmem:[#allocation2 + $0x28] sm:$0xf]
    %v750 = vld [vmem:[#allocation2 + $0x2c] sm:$0xf]
    %v751 = vld [vmem:[#allocation2 + $0x30] sm:$0xf]
    %v752 = vld [vmem:[#allocation2 + $0x34] sm:$0xf]
    %v753 = vld [vmem:[#allocation2 + $0x38] sm:$0xf]
    %v754 = vld [vmem:[#allocation2 + $0x3c] sm:$0xf]
    %v755 = vld [vmem:[#allocation2 + $0x40] sm:$0xf]
    %v756 = vld [vmem:[#allocation2 + $0x44] sm:$0xf]
    %v757 = vld [vmem:[#allocation2 + $0x48] sm:$0xf]
    %v758 = vld [vmem:[#allocation2 + $0x4c] sm:$0xf]
    %v759 = vld [vmem:[#allocation2 + $0x50] sm:$0xf]
    %v760 = vld [vmem:[#allocation2 + $0x54] sm:$0xf]
    %v761 = vld [vmem:[#allocation2 + $0x58] sm:$0xf]
    %v762 = vld [vmem:[#allocation2 + $0x5c] sm:$0xf]
    %v763 = vld [vmem:[#allocation2 + $0x60] sm:$0xf]
    %v764 = vld [vmem:[#allocation2 + $0x64] sm:$0xf]
    %v765 = vld [vmem:[#allocation2 + $0x68] sm:$0xf]
    %v766 = vld [vmem:[#allocation2 + $0x6c] sm:$0xf]
    %v767 = vld [vmem:[#allocation2 + $0x70] sm:$0xf]
    %v768 = vld [vmem:[#allocation2 + $0x74] sm:$0xf]
    %v769 = vld [vmem:[#allocation2 + $0x78] sm:$0xf]
    %v770 = vld [vmem:[#allocation2 + $0x7c] sm:$0xf]
    %v803 = vunpack.c.l.b16 %v739
    %v804 = vunpack.c.l.b16 %v740
    %v805 = vunpack.c.l.b16 %v741
    %v806 = vunpack.c.l.b16 %v742
    %v807 = vunpack.c.l.b16 %v743
    %v808 = vunpack.c.l.b16 %v744
    %v809 = vunpack.c.l.b16 %v745
    %v810 = vunpack.c.l.b16 %v746
    %v811 = vunpack.c.l.b16 %v747
    %v812 = vunpack.c.l.b16 %v748
    %v813 = vunpack.c.l.b16 %v749
    %v814 = vunpack.c.l.b16 %v750
    %v815 = vunpack.c.l.b16 %v751
    %v816 = vunpack.c.l.b16 %v752
    %v817 = vunpack.c.l.b16 %v753
    %v818 = vunpack.c.l.b16 %v754
    %v819 = vunpack.c.l.b16 %v755
    %v820 = vunpack.c.l.b16 %v756
    %v821 = vunpack.c.l.b16 %v757
    %v822 = vunpack.c.l.b16 %v758
    %v823 = vunpack.c.l.b16 %v759
    %v824 = vunpack.c.l.b16 %v760
    %v825 = vunpack.c.l.b16 %v761
    %v826 = vunpack.c.l.b16 %v762
    %v827 = vunpack.c.l.b16 %v763
    %v828 = vunpack.c.l.b16 %v764
    %v829 = vunpack.c.l.b16 %v765
    %v830 = vunpack.c.l.b16 %v766
    %v831 = vunpack.c.l.b16 %v767
    %v832 = vunpack.c.l.b16 %v768
    %v833 = vunpack.c.l.b16 %v769
    %v834 = vunpack.c.l.b16 %v770
    %v835 = vpack.c.b16 %v804, %v803
    %v836 = vpack.c.b16 %v806, %v805
    %v837 = vpack.c.b16 %v808, %v807
    %v838 = vpack.c.b16 %v810, %v809
    %v839 = vpack.c.b16 %v812, %v811
    %v840 = vpack.c.b16 %v814, %v813
    %v841 = vpack.c.b16 %v816, %v815
    %v842 = vpack.c.b16 %v818, %v817
    %v843 = vpack.c.b16 %v820, %v819
    %v844 = vpack.c.b16 %v822, %v821
    %v845 = vpack.c.b16 %v824, %v823
    %v846 = vpack.c.b16 %v826, %v825
    %v847 = vpack.c.b16 %v828, %v827
    %v848 = vpack.c.b16 %v830, %v829
    %v849 = vpack.c.b16 %v832, %v831
    %v850 = vpack.c.b16 %v834, %v833
    %867 = vmatpush.bf16.msra.mxu0 %v842
    %868 = vmatpush.bf16.msra.mxu0 %v841
    %869 = vmatpush.bf16.msra.mxu0 %v840
    %870 = vmatpush.bf16.msra.mxu0 %v839
    %871 = vmatpush.bf16.msra.mxu0 %v838
    %872 = vmatpush.bf16.msra.mxu0 %v837
    %873 = vmatpush.bf16.msra.mxu0 %v836
    %874 = vmatpush.bf16.msra.mxu0 %v835
    %875 = vmatmul.bf16.gmra.mxu0 %v359
    %v876 = vpop.f32.mrf.mxu0
    %v877 = vadd.f32 0.0, %v876
    %v878 = vpop.f32.mrf.mxu0
    %879 = vdwg.mxu0
    %880 = vmatpush.bf16.msra.mxu0 %v850
    %881 = vmatpush.bf16.msra.mxu0 %v849
    %882 = vmatpush.bf16.msra.mxu0 %v848
    %883 = vmatpush.bf16.msra.mxu0 %v847
    %884 = vmatpush.bf16.msra.mxu0 %v846
    %885 = vmatpush.bf16.msra.mxu0 %v845
    %886 = vmatpush.bf16.msra.mxu0 %v844
    %887 = vmatpush.bf16.msra.mxu0 %v843
    %888 = vmatmul.bf16.gmra.mxu0 %v360
    %v889 = vpop.f32.mrf.mxu0
    %v890 = vadd.f32 %v877, %v889
    %v891 = vpop.f32.mrf.mxu0
    %892 = vdwg.mxu0
    %893 = vst [vmem:[#allocation9] sm:$0xff] %v890
    // Predicated region
    $region18: #{tpu_custom_call.1} parent=1 // pred_check
      _
    $region19: #{tpu_custom_call.1} parent=1 // pred_check_branch
      %895 = sbr.rel (0) target = $region21
    $region20: #{tpu_custom_call.1} parent=1 // pred_region
      %897 = vsyncadd [#allocation6], 0
      %s899 = sshll.u32 [#allocation9], 4
      %s900 = int_to_ptr.vmem [resolvable:$true] %s899
      %s901 = sshll.u32 %s2, 4
      %s902 = int_to_ptr.hbm [resolvable:$true] %s901
      %904 = dma.vmem_to_hbm [thread:$0]  %s900, 128, %s902, [#allocation6]
    $region21: #{tpu_custom_call.1} parent=1 // pred_fallthru
      _
    // Predicated region
    $region22: #{tpu_custom_call.1} parent=1 // pred_check
      _
    $region23: #{tpu_custom_call.1} parent=1 // pred_check_branch
      %906 = sbr.rel (0) target = $region25
    $region24: #{tpu_custom_call.1} parent=1 // pred_region
      %908 = dma.done [#allocation6], 128
    $region25: #{tpu_custom_call.1} parent=1 // pred_fallthru
      _
    %909 = vsyncpa [#allocation5], 1
    %910 = vsyncpa [#allocation8], 1
    %911 = vsyncpa [#allocation6], 1

</llo_original>
